<compile_context>
chip_gen: v7x
topology: tpu7x:2x2x1
jax: 0.10.0
libtpu: 0.0.40
codegen_flags: <defaults>
</compile_context>

<pallas_src>
import functools

import jax
import jax.numpy as jnp
from jax import lax
from jax.experimental import pallas as pl
from jax.experimental.pallas import tpu as pltpu

_EPS_BN = 1e-5          # torch.nn.BatchNorm1d default eps
_EPS_DIV = 1e-12
_INV_SQRT_2PI = 0.3989422804014327
_SQRT_2_OVER_PI = 0.7978845608028654
_LANE = 128             # pad feature dims to multiples of the lane width
_SUBLANE = 8            # batch must be a multiple of the sublane count


def _round_up(x, m):
    return (x + m - 1) // m * m


def _layer_math(u, s, w_bf16, b, gamma, beta):
    """One MomentLayer_no_corr forward.  Shared by the kernel body and the JAX ref."""
    # --- Mnn_Linear_without_Corr: mean through W, variance through W**2 (no corr).
    # bf16 operands on the MXU, f32 accumulation; elementwise math stays f32.
    w_f32 = w_bf16.astype(jnp.float32)
    u_lin = jnp.dot(u.astype(jnp.bfloat16), w_bf16,
                    preferred_element_type=jnp.float32) + b
    w2_bf16 = (w_f32 * w_f32).astype(jnp.bfloat16)      # square in-kernel (1 VPU pass)
    var_lin = jnp.dot((s * s).astype(jnp.bfloat16), w2_bf16,
                      preferred_element_type=jnp.float32)
    s_lin = jnp.sqrt(jnp.maximum(var_lin, 0.0))

    # --- BatchNorm1d on the mean channel (training mode -> biased batch stats).
    # TODO(synk): running-stat update / eval-mode BN is not implemented.
    mu = jnp.mean(u_lin, axis=0, keepdims=True)
    centered = u_lin - mu                                # hoisted CSE (was computed 3x)
    var = jnp.mean(centered * centered, axis=0, keepdims=True)
    inv_std = lax.rsqrt(var + _EPS_BN)                   # EUP rsqrt
    scale = gamma * inv_std                              # [1, N] row shared by u and s
    u_bn = centered * scale + beta
    # Mnn_Std_Bn1d(bias=False): std channel rescaled by the same gamma / sqrt(var+eps).
    s_bn = s_lin * scale

    # --- Moment activation: Gaussian-propagated ReLU moments.
    # TODO(synk): original Mnn_Activate_Mean/Std are LIF Dawson-function moment
    # activations (custom autograd, no closed form); closed-form ReLU moments used.
    z = jnp.clip(u_bn / (s_bn + _EPS_DIV), -30.0, 30.0)
    pdf = _INV_SQRT_2PI * jnp.exp(-0.5 * z * z)
    cdf = 0.5 * (1.0 + jnp.tanh(_SQRT_2_OVER_PI * (z + 0.044715 * z * z * z)))
    u_act = u_bn * cdf + s_bn * pdf
    # Expanded variance: u^2*P*(1-P) + s^2*(P - p^2) + u*s*p*(1-2P)  (no cancellation).
    var_act = ((u_bn * u_bn) * (cdf * (1.0 - cdf))
               + (s_bn * s_bn) * (cdf - pdf * pdf)
               + (u_bn * s_bn) * (pdf * (1.0 - 2.0 * cdf)))
    s_act = jnp.sqrt(jnp.maximum(var_act, 0.0))
    return u_act, s_act


def _monet_kernel(num_layers, u_ref, s_ref, w_ref, b_ref, g_ref, be_ref,
                  u_out_ref, s_out_ref):
    """Whole network in one kernel: activations stay on-chip between layers."""
    u = u_ref[...]
    s = s_ref[...]
    for l in range(num_layers):          # static unroll; layer count is small
        u, s = _layer_math(u, s, w_ref[l], b_ref[l], g_ref[l], be_ref[l])
    u_out_ref[...] = u
    s_out_ref[...] = s


def monet_forward(u, s, params):
    """Full MoNet_no_corr forward as a single fused pallas_call.

    params: list of (w_t [K,N] f32, b [1,N], gamma [1,N], beta [1,N]).
    """
    batch, in_features = u.shape
    assert batch % _SUBLANE == 0, (
        "batch must be a multiple of 8 (BN stats are over the batch axis; "
        "batch-row masking not implemented)")
    num_layers = len(params)
    feat_dims = [in_features] + [w.shape[1] for (w, _, _, _) in params]
    F = _round_up(max(feat_dims), _LANE)          # common lane-dense feature width
    out_features = params[-1][0].shape[1]

    def pad_row(x):
        return jnp.pad(x, ((0, 0), (0, F - x.shape[1])))

    # Zero-pad every layer to [F, F] and stack.  Padded b/gamma/beta are 0, so padded
    # features produce u_bn = s_bn = 0 and u_act = s_act = 0 exactly — they feed exact
    # zeros into the next layer's matmuls and never perturb the real outputs.
    w_stack = jnp.stack(
        [jnp.pad(w, ((0, F - w.shape[0]), (0, F - w.shape[1])))
         for (w, _, _, _) in params]).astype(jnp.bfloat16)
    b_stack = jnp.stack([pad_row(b) for (_, b, _, _) in params])
    g_stack = jnp.stack([pad_row(g) for (_, _, g, _) in params])
    be_stack = jnp.stack([pad_row(be) for (_, _, _, be) in params])
    u_pad = pad_row(u.astype(jnp.float32))
    s_pad = pad_row(s.astype(jnp.float32))

    vmem = pl.BlockSpec(memory_space=pltpu.MemorySpace.VMEM)
    out_sds = jax.ShapeDtypeStruct((batch, F), jnp.float32)

    act_bytes = 4 * batch * F * 4                                   # u/s in + u/s out
    param_bytes = (w_stack.size * 2
                   + (b_stack.size + g_stack.size + be_stack.size) * 4)
    need_bytes = int(act_bytes + param_bytes)
    vmem_limit = int(min(max(4 * need_bytes + (1 << 20), 4 << 20), 32 << 20))

    cost = pl.CostEstimate(
        flops=int(num_layers * 4 * batch * F * F),        # two matmuls per layer
        transcendentals=int(num_layers * 4 * batch * F),  # exp, tanh, rsqrt, sqrt
        bytes_accessed=need_bytes,
    )

    kernel = functools.partial(_monet_kernel, num_layers)
    u_out, s_out = pl.pallas_call(
        kernel,
        out_shape=(out_sds, out_sds),
        in_specs=[vmem] * 6,
        out_specs=(vmem, vmem),
        compiler_params=pltpu.CompilerParams(vmem_limit_bytes=vmem_limit),
        cost_estimate=cost,
    )(u_pad, s_pad, w_stack, b_stack, g_stack, be_stack)
    return u_out[:, :out_features], s_out[:, :out_features]


def monet_forward_ref(u, s, params):
    """Pure-JAX reference of the same math (same bf16 matmul operands)."""
    for (w, b, gamma, beta) in params:
        u, s = _layer_math(u, s, w.astype(jnp.bfloat16), b, gamma, beta)
    return u, s


def init_params(key, layer_sizes):
    """Deterministic parameter construction matching the module's __init__ shapes."""
    params = []
    for i in range(len(layer_sizes) - 1):
        fan_in, fan_out = layer_sizes[i], layer_sizes[i + 1]
        key, k_w, k_b = jax.random.split(key, 3)
        bound = 1.0 / jnp.sqrt(jnp.float32(fan_in))
        # nn.Linear default init: U(-1/sqrt(fan_in), 1/sqrt(fan_in))
        w = jax.random.uniform(k_w, (fan_out, fan_in), jnp.float32, -bound, bound)
        b = jax.random.uniform(k_b, (fan_out,), jnp.float32, -bound, bound)
        gamma = jnp.full((fan_out,), 2.5, jnp.float32)   # bn_mean.weight.data.fill_(2.5)
        beta = jnp.full((fan_out,), 2.5, jnp.float32)    # bn_mean.bias.data.fill_(2.5)
        params.append((w.T, b.reshape(1, -1), gamma.reshape(1, -1), beta.reshape(1, -1)))
    return params


if __name__ == "__main__":
    # Small config consistent with MoNet_no_corr(num_hidden_layers, hidden, in, out)
    num_hidden_layers, hidden_layer_size, input_size, output_size = 3, 32, 2, 1
    batch = 8
    layer_sizes = [input_size] + [hidden_layer_size] * num_hidden_layers + [output_size]

    key = jax.random.PRNGKey(0)
    k_params, k_u, k_s = jax.random.split(key, 3)
    params = init_params(k_params, layer_sizes)

    u_in = jax.random.normal(k_u, (batch, input_size), jnp.float32)
    # std inputs must be non-negative
    s_in = jax.nn.softplus(jax.random.normal(k_s, (batch, input_size), jnp.float32))

    fwd = jax.jit(monet_forward)
    u_out, s_out = fwd(u_in, s_in, params)
    jax.block_until_ready((u_out, s_out))

    # Correctness check against the pure-JAX reference of the same math.
    u_ref, s_ref = monet_forward_ref(u_in, s_in, params)
    assert u_out.shape == (batch, output_size) and s_out.shape == (batch, output_size)
    assert jnp.allclose(u_out, u_ref, atol=1e-4, rtol=1e-4), \
        float(jnp.max(jnp.abs(u_out - u_ref)))
    assert jnp.allclose(s_out, s_ref, atol=1e-4, rtol=1e-4), \
        float(jnp.max(jnp.abs(s_out - s_ref)))

    print("KERNEL_OK")
</pallas_src>

<mosaic_0001>
module attributes {stable_mosaic.version = 11 : i64} {
  func.func @_monet_kernel(%arg0: memref<8x128xf32, #tpu.memory_space<vmem>>, %arg1: memref<8x128xf32, #tpu.memory_space<vmem>>, %arg2: memref<4x128x128xbf16, #tpu.memory_space<vmem>>, %arg3: memref<4x1x128xf32, #tpu.memory_space<vmem>>, %arg4: memref<4x1x128xf32, #tpu.memory_space<vmem>>, %arg5: memref<4x1x128xf32, #tpu.memory_space<vmem>>, %arg6: memref<8x128xf32, #tpu.memory_space<vmem>>, %arg7: memref<8x128xf32, #tpu.memory_space<vmem>>) attributes {dimension_semantics = [], scalar_prefetch = 0 : i64, scratch_operands = 0 : i64, tpu.core_type = #tpu.core_type<tc>} {
    %c0 = arith.constant 0 : index
    %c0_0 = arith.constant 0 : index
    %0 = vector.load %arg0[%c0, %c0_0] : memref<8x128xf32, #tpu.memory_space<vmem>>, vector<8x128xf32>
    %c0_1 = arith.constant 0 : index
    %c0_2 = arith.constant 0 : index
    %1 = vector.load %arg1[%c0_1, %c0_2] : memref<8x128xf32, #tpu.memory_space<vmem>>, vector<8x128xf32>
    %c0_3 = arith.constant 0 : index
    %c0_4 = arith.constant 0 : index
    %c0_5 = arith.constant 0 : index
    %2 = vector.load %arg2[%c0_3, %c0_4, %c0_5] : memref<4x128x128xbf16, #tpu.memory_space<vmem>>, vector<1x128x128xbf16>
    %3 = vector.shape_cast %2 : vector<1x128x128xbf16> to vector<128x128xbf16>
    %c0_6 = arith.constant 0 : index
    %c0_7 = arith.constant 0 : index
    %c0_8 = arith.constant 0 : index
    %4 = vector.load %arg3[%c0_6, %c0_7, %c0_8] : memref<4x1x128xf32, #tpu.memory_space<vmem>>, vector<1x1x128xf32>
    %5 = vector.shape_cast %4 : vector<1x1x128xf32> to vector<1x128xf32>
    %c0_9 = arith.constant 0 : index
    %c0_10 = arith.constant 0 : index
    %c0_11 = arith.constant 0 : index
    %6 = vector.load %arg4[%c0_9, %c0_10, %c0_11] : memref<4x1x128xf32, #tpu.memory_space<vmem>>, vector<1x1x128xf32>
    %7 = vector.shape_cast %6 : vector<1x1x128xf32> to vector<1x128xf32>
    %c0_12 = arith.constant 0 : index
    %c0_13 = arith.constant 0 : index
    %c0_14 = arith.constant 0 : index
    %8 = vector.load %arg5[%c0_12, %c0_13, %c0_14] : memref<4x1x128xf32, #tpu.memory_space<vmem>>, vector<1x1x128xf32>
    %9 = vector.shape_cast %8 : vector<1x1x128xf32> to vector<1x128xf32>
    %10 = arith.extf %3 : vector<128x128xbf16> to vector<128x128xf32>
    %11 = arith.truncf %0 : vector<8x128xf32> to vector<8x128xbf16>
    %cst = arith.constant dense<0.000000e+00> : vector<8x128xf32>
    %12 = tpu.matmul %11, %3, %cst {dimension_numbers = #tpu.dot_dimension_numbers<[1], [0], [0], [1], [0, 0, 1, 1], [], []>} : vector<8x128xbf16>, vector<128x128xbf16>, vector<8x128xf32> -> vector<8x128xf32>
    %13 = vector.broadcast %5 : vector<1x128xf32> to vector<8x128xf32>
    %14 = arith.addf %12, %13 : vector<8x128xf32>
    %15 = arith.mulf %10, %10 : vector<128x128xf32>
    %16 = arith.truncf %15 : vector<128x128xf32> to vector<128x128xbf16>
    %17 = arith.mulf %1, %1 : vector<8x128xf32>
    %18 = arith.truncf %17 : vector<8x128xf32> to vector<8x128xbf16>
    %cst_15 = arith.constant dense<0.000000e+00> : vector<8x128xf32>
    %19 = tpu.matmul %18, %16, %cst_15 {dimension_numbers = #tpu.dot_dimension_numbers<[1], [0], [0], [1], [0, 0, 1, 1], [], []>} : vector<8x128xbf16>, vector<128x128xbf16>, vector<8x128xf32> -> vector<8x128xf32>
    %cst_16 = arith.constant 0.000000e+00 : f32
    %20 = vector.broadcast %cst_16 : f32 to vector<8x128xf32>
    %21 = arith.maximumf %19, %20 : vector<8x128xf32>
    %22 = math.sqrt %21 : vector<8x128xf32>
    %cst_17 = arith.constant dense<0.000000e+00> : vector<128xf32>
    %23 = vector.multi_reduction <add>, %14, %cst_17 [0] : vector<8x128xf32> to vector<128xf32>
    %24 = vector.shape_cast %23 : vector<128xf32> to vector<1x128xf32>
    %cst_18 = arith.constant 8.000000e+00 : f32
    %25 = vector.broadcast %cst_18 : f32 to vector<1x128xf32>
    %26 = arith.divf %24, %25 : vector<1x128xf32>
    %27 = vector.broadcast %26 : vector<1x128xf32> to vector<8x128xf32>
    %28 = arith.subf %14, %27 : vector<8x128xf32>
    %29 = arith.mulf %28, %28 : vector<8x128xf32>
    %cst_19 = arith.constant dense<0.000000e+00> : vector<128xf32>
    %30 = vector.multi_reduction <add>, %29, %cst_19 [0] : vector<8x128xf32> to vector<128xf32>
    %31 = vector.shape_cast %30 : vector<128xf32> to vector<1x128xf32>
    %cst_20 = arith.constant 8.000000e+00 : f32
    %32 = vector.broadcast %cst_20 : f32 to vector<1x128xf32>
    %33 = arith.divf %31, %32 : vector<1x128xf32>
    %cst_21 = arith.constant 9.99999974E-6 : f32
    %34 = vector.broadcast %cst_21 : f32 to vector<1x128xf32>
    %35 = arith.addf %33, %34 : vector<1x128xf32>
    %36 = math.rsqrt %35 : vector<1x128xf32>
    %37 = arith.mulf %7, %36 : vector<1x128xf32>
    %38 = vector.broadcast %37 : vector<1x128xf32> to vector<8x128xf32>
    %39 = arith.mulf %28, %38 : vector<8x128xf32>
    %40 = vector.broadcast %9 : vector<1x128xf32> to vector<8x128xf32>
    %41 = arith.addf %39, %40 : vector<8x128xf32>
    %42 = vector.broadcast %37 : vector<1x128xf32> to vector<8x128xf32>
    %43 = arith.mulf %22, %42 : vector<8x128xf32>
    %cst_22 = arith.constant 9.99999996E-13 : f32
    %44 = vector.broadcast %cst_22 : f32 to vector<8x128xf32>
    %45 = arith.addf %43, %44 : vector<8x128xf32>
    %46 = arith.divf %41, %45 : vector<8x128xf32>
    %cst_23 = arith.constant -3.000000e+01 : f32
    %cst_24 = arith.constant 3.000000e+01 : f32
    %47 = vector.broadcast %cst_23 : f32 to vector<8x128xf32>
    %48 = arith.maximumf %47, %46 : vector<8x128xf32>
    %49 = vector.broadcast %cst_24 : f32 to vector<8x128xf32>
    %50 = arith.minimumf %49, %48 : vector<8x128xf32>
    %cst_25 = arith.constant -5.000000e-01 : f32
    %51 = vector.broadcast %cst_25 : f32 to vector<8x128xf32>
    %52 = arith.mulf %51, %50 : vector<8x128xf32>
    %53 = arith.mulf %52, %50 : vector<8x128xf32>
    %54 = math.exp %53 : vector<8x128xf32>
    %cst_26 = arith.constant 0.398942292 : f32
    %55 = vector.broadcast %cst_26 : f32 to vector<8x128xf32>
    %56 = arith.mulf %55, %54 : vector<8x128xf32>
    %cst_27 = arith.constant 4.471500e-02 : f32
    %57 = vector.broadcast %cst_27 : f32 to vector<8x128xf32>
    %58 = arith.mulf %57, %50 : vector<8x128xf32>
    %59 = arith.mulf %58, %50 : vector<8x128xf32>
    %60 = arith.mulf %59, %50 : vector<8x128xf32>
    %61 = arith.addf %50, %60 : vector<8x128xf32>
    %cst_28 = arith.constant 0.797884583 : f32
    %62 = vector.broadcast %cst_28 : f32 to vector<8x128xf32>
    %63 = arith.mulf %62, %61 : vector<8x128xf32>
    %64 = math.tanh %63 : vector<8x128xf32>
    %cst_29 = arith.constant 1.000000e+00 : f32
    %65 = vector.broadcast %cst_29 : f32 to vector<8x128xf32>
    %66 = arith.addf %65, %64 : vector<8x128xf32>
    %cst_30 = arith.constant 5.000000e-01 : f32
    %67 = vector.broadcast %cst_30 : f32 to vector<8x128xf32>
    %68 = arith.mulf %67, %66 : vector<8x128xf32>
    %69 = arith.mulf %41, %68 : vector<8x128xf32>
    %70 = arith.mulf %43, %56 : vector<8x128xf32>
    %71 = arith.addf %69, %70 : vector<8x128xf32>
    %72 = arith.mulf %41, %41 : vector<8x128xf32>
    %cst_31 = arith.constant 1.000000e+00 : f32
    %73 = vector.broadcast %cst_31 : f32 to vector<8x128xf32>
    %74 = arith.subf %73, %68 : vector<8x128xf32>
    %75 = arith.mulf %68, %74 : vector<8x128xf32>
    %76 = arith.mulf %72, %75 : vector<8x128xf32>
    %77 = arith.mulf %43, %43 : vector<8x128xf32>
    %78 = arith.mulf %56, %56 : vector<8x128xf32>
    %79 = arith.subf %68, %78 : vector<8x128xf32>
    %80 = arith.mulf %77, %79 : vector<8x128xf32>
    %81 = arith.addf %76, %80 : vector<8x128xf32>
    %82 = arith.mulf %41, %43 : vector<8x128xf32>
    %cst_32 = arith.constant 2.000000e+00 : f32
    %83 = vector.broadcast %cst_32 : f32 to vector<8x128xf32>
    %84 = arith.mulf %83, %68 : vector<8x128xf32>
    %cst_33 = arith.constant 1.000000e+00 : f32
    %85 = vector.broadcast %cst_33 : f32 to vector<8x128xf32>
    %86 = arith.subf %85, %84 : vector<8x128xf32>
    %87 = arith.mulf %56, %86 : vector<8x128xf32>
    %88 = arith.mulf %82, %87 : vector<8x128xf32>
    %89 = arith.addf %81, %88 : vector<8x128xf32>
    %cst_34 = arith.constant 0.000000e+00 : f32
    %90 = vector.broadcast %cst_34 : f32 to vector<8x128xf32>
    %91 = arith.maximumf %89, %90 : vector<8x128xf32>
    %92 = math.sqrt %91 : vector<8x128xf32>
    %c1 = arith.constant 1 : index
    %c0_35 = arith.constant 0 : index
    %c0_36 = arith.constant 0 : index
    %93 = vector.load %arg2[%c1, %c0_35, %c0_36] : memref<4x128x128xbf16, #tpu.memory_space<vmem>>, vector<1x128x128xbf16>
    %94 = vector.shape_cast %93 : vector<1x128x128xbf16> to vector<128x128xbf16>
    %c1_37 = arith.constant 1 : index
    %c0_38 = arith.constant 0 : index
    %c0_39 = arith.constant 0 : index
    %95 = vector.load %arg3[%c1_37, %c0_38, %c0_39] : memref<4x1x128xf32, #tpu.memory_space<vmem>>, vector<1x1x128xf32>
    %96 = vector.shape_cast %95 : vector<1x1x128xf32> to vector<1x128xf32>
    %c1_40 = arith.constant 1 : index
    %c0_41 = arith.constant 0 : index
    %c0_42 = arith.constant 0 : index
    %97 = vector.load %arg4[%c1_40, %c0_41, %c0_42] : memref<4x1x128xf32, #tpu.memory_space<vmem>>, vector<1x1x128xf32>
    %98 = vector.shape_cast %97 : vector<1x1x128xf32> to vector<1x128xf32>
    %c1_43 = arith.constant 1 : index
    %c0_44 = arith.constant 0 : index
    %c0_45 = arith.constant 0 : index
    %99 = vector.load %arg5[%c1_43, %c0_44, %c0_45] : memref<4x1x128xf32, #tpu.memory_space<vmem>>, vector<1x1x128xf32>
    %100 = vector.shape_cast %99 : vector<1x1x128xf32> to vector<1x128xf32>
    %101 = arith.extf %94 : vector<128x128xbf16> to vector<128x128xf32>
    %102 = arith.truncf %71 : vector<8x128xf32> to vector<8x128xbf16>
    %cst_46 = arith.constant dense<0.000000e+00> : vector<8x128xf32>
    %103 = tpu.matmul %102, %94, %cst_46 {dimension_numbers = #tpu.dot_dimension_numbers<[1], [0], [0], [1], [0, 0, 1, 1], [], []>} : vector<8x128xbf16>, vector<128x128xbf16>, vector<8x128xf32> -> vector<8x128xf32>
    %104 = vector.broadcast %96 : vector<1x128xf32> to vector<8x128xf32>
    %105 = arith.addf %103, %104 : vector<8x128xf32>
    %106 = arith.mulf %101, %101 : vector<128x128xf32>
    %107 = arith.truncf %106 : vector<128x128xf32> to vector<128x128xbf16>
    %108 = arith.mulf %92, %92 : vector<8x128xf32>
    %109 = arith.truncf %108 : vector<8x128xf32> to vector<8x128xbf16>
    %cst_47 = arith.constant dense<0.000000e+00> : vector<8x128xf32>
    %110 = tpu.matmul %109, %107, %cst_47 {dimension_numbers = #tpu.dot_dimension_numbers<[1], [0], [0], [1], [0, 0, 1, 1], [], []>} : vector<8x128xbf16>, vector<128x128xbf16>, vector<8x128xf32> -> vector<8x128xf32>
    %cst_48 = arith.constant 0.000000e+00 : f32
    %111 = vector.broadcast %cst_48 : f32 to vector<8x128xf32>
    %112 = arith.maximumf %110, %111 : vector<8x128xf32>
    %113 = math.sqrt %112 : vector<8x128xf32>
    %cst_49 = arith.constant dense<0.000000e+00> : vector<128xf32>
    %114 = vector.multi_reduction <add>, %105, %cst_49 [0] : vector<8x128xf32> to vector<128xf32>
    %115 = vector.shape_cast %114 : vector<128xf32> to vector<1x128xf32>
    %cst_50 = arith.constant 8.000000e+00 : f32
    %116 = vector.broadcast %cst_50 : f32 to vector<1x128xf32>
    %117 = arith.divf %115, %116 : vector<1x128xf32>
    %118 = vector.broadcast %117 : vector<1x128xf32> to vector<8x128xf32>
    %119 = arith.subf %105, %118 : vector<8x128xf32>
    %120 = arith.mulf %119, %119 : vector<8x128xf32>
    %cst_51 = arith.constant dense<0.000000e+00> : vector<128xf32>
    %121 = vector.multi_reduction <add>, %120, %cst_51 [0] : vector<8x128xf32> to vector<128xf32>
    %122 = vector.shape_cast %121 : vector<128xf32> to vector<1x128xf32>
    %cst_52 = arith.constant 8.000000e+00 : f32
    %123 = vector.broadcast %cst_52 : f32 to vector<1x128xf32>
    %124 = arith.divf %122, %123 : vector<1x128xf32>
    %cst_53 = arith.constant 9.99999974E-6 : f32
    %125 = vector.broadcast %cst_53 : f32 to vector<1x128xf32>
    %126 = arith.addf %124, %125 : vector<1x128xf32>
    %127 = math.rsqrt %126 : vector<1x128xf32>
    %128 = arith.mulf %98, %127 : vector<1x128xf32>
    %129 = vector.broadcast %128 : vector<1x128xf32> to vector<8x128xf32>
    %130 = arith.mulf %119, %129 : vector<8x128xf32>
    %131 = vector.broadcast %100 : vector<1x128xf32> to vector<8x128xf32>
    %132 = arith.addf %130, %131 : vector<8x128xf32>
    %133 = vector.broadcast %128 : vector<1x128xf32> to vector<8x128xf32>
    %134 = arith.mulf %113, %133 : vector<8x128xf32>
    %cst_54 = arith.constant 9.99999996E-13 : f32
    %135 = vector.broadcast %cst_54 : f32 to vector<8x128xf32>
    %136 = arith.addf %134, %135 : vector<8x128xf32>
    %137 = arith.divf %132, %136 : vector<8x128xf32>
    %cst_55 = arith.constant -3.000000e+01 : f32
    %cst_56 = arith.constant 3.000000e+01 : f32
    %138 = vector.broadcast %cst_55 : f32 to vector<8x128xf32>
    %139 = arith.maximumf %138, %137 : vector<8x128xf32>
    %140 = vector.broadcast %cst_56 : f32 to vector<8x128xf32>
    %141 = arith.minimumf %140, %139 : vector<8x128xf32>
    %cst_57 = arith.constant -5.000000e-01 : f32
    %142 = vector.broadcast %cst_57 : f32 to vector<8x128xf32>
    %143 = arith.mulf %142, %141 : vector<8x128xf32>
    %144 = arith.mulf %143, %141 : vector<8x128xf32>
    %145 = math.exp %144 : vector<8x128xf32>
    %cst_58 = arith.constant 0.398942292 : f32
    %146 = vector.broadcast %cst_58 : f32 to vector<8x128xf32>
    %147 = arith.mulf %146, %145 : vector<8x128xf32>
    %cst_59 = arith.constant 4.471500e-02 : f32
    %148 = vector.broadcast %cst_59 : f32 to vector<8x128xf32>
    %149 = arith.mulf %148, %141 : vector<8x128xf32>
    %150 = arith.mulf %149, %141 : vector<8x128xf32>
    %151 = arith.mulf %150, %141 : vector<8x128xf32>
    %152 = arith.addf %141, %151 : vector<8x128xf32>
    %cst_60 = arith.constant 0.797884583 : f32
    %153 = vector.broadcast %cst_60 : f32 to vector<8x128xf32>
    %154 = arith.mulf %153, %152 : vector<8x128xf32>
    %155 = math.tanh %154 : vector<8x128xf32>
    %cst_61 = arith.constant 1.000000e+00 : f32
    %156 = vector.broadcast %cst_61 : f32 to vector<8x128xf32>
    %157 = arith.addf %156, %155 : vector<8x128xf32>
    %cst_62 = arith.constant 5.000000e-01 : f32
    %158 = vector.broadcast %cst_62 : f32 to vector<8x128xf32>
    %159 = arith.mulf %158, %157 : vector<8x128xf32>
    %160 = arith.mulf %132, %159 : vector<8x128xf32>
    %161 = arith.mulf %134, %147 : vector<8x128xf32>
    %162 = arith.addf %160, %161 : vector<8x128xf32>
    %163 = arith.mulf %132, %132 : vector<8x128xf32>
    %cst_63 = arith.constant 1.000000e+00 : f32
    %164 = vector.broadcast %cst_63 : f32 to vector<8x128xf32>
    %165 = arith.subf %164, %159 : vector<8x128xf32>
    %166 = arith.mulf %159, %165 : vector<8x128xf32>
    %167 = arith.mulf %163, %166 : vector<8x128xf32>
    %168 = arith.mulf %134, %134 : vector<8x128xf32>
    %169 = arith.mulf %147, %147 : vector<8x128xf32>
    %170 = arith.subf %159, %169 : vector<8x128xf32>
    %171 = arith.mulf %168, %170 : vector<8x128xf32>
    %172 = arith.addf %167, %171 : vector<8x128xf32>
    %173 = arith.mulf %132, %134 : vector<8x128xf32>
    %cst_64 = arith.constant 2.000000e+00 : f32
    %174 = vector.broadcast %cst_64 : f32 to vector<8x128xf32>
    %175 = arith.mulf %174, %159 : vector<8x128xf32>
    %cst_65 = arith.constant 1.000000e+00 : f32
    %176 = vector.broadcast %cst_65 : f32 to vector<8x128xf32>
    %177 = arith.subf %176, %175 : vector<8x128xf32>
    %178 = arith.mulf %147, %177 : vector<8x128xf32>
    %179 = arith.mulf %173, %178 : vector<8x128xf32>
    %180 = arith.addf %172, %179 : vector<8x128xf32>
    %cst_66 = arith.constant 0.000000e+00 : f32
    %181 = vector.broadcast %cst_66 : f32 to vector<8x128xf32>
    %182 = arith.maximumf %180, %181 : vector<8x128xf32>
    %183 = math.sqrt %182 : vector<8x128xf32>
    %c2 = arith.constant 2 : index
    %c0_67 = arith.constant 0 : index
    %c0_68 = arith.constant 0 : index
    %184 = vector.load %arg2[%c2, %c0_67, %c0_68] : memref<4x128x128xbf16, #tpu.memory_space<vmem>>, vector<1x128x128xbf16>
    %185 = vector.shape_cast %184 : vector<1x128x128xbf16> to vector<128x128xbf16>
    %c2_69 = arith.constant 2 : index
    %c0_70 = arith.constant 0 : index
    %c0_71 = arith.constant 0 : index
    %186 = vector.load %arg3[%c2_69, %c0_70, %c0_71] : memref<4x1x128xf32, #tpu.memory_space<vmem>>, vector<1x1x128xf32>
    %187 = vector.shape_cast %186 : vector<1x1x128xf32> to vector<1x128xf32>
    %c2_72 = arith.constant 2 : index
    %c0_73 = arith.constant 0 : index
    %c0_74 = arith.constant 0 : index
    %188 = vector.load %arg4[%c2_72, %c0_73, %c0_74] : memref<4x1x128xf32, #tpu.memory_space<vmem>>, vector<1x1x128xf32>
    %189 = vector.shape_cast %188 : vector<1x1x128xf32> to vector<1x128xf32>
    %c2_75 = arith.constant 2 : index
    %c0_76 = arith.constant 0 : index
    %c0_77 = arith.constant 0 : index
    %190 = vector.load %arg5[%c2_75, %c0_76, %c0_77] : memref<4x1x128xf32, #tpu.memory_space<vmem>>, vector<1x1x128xf32>
    %191 = vector.shape_cast %190 : vector<1x1x128xf32> to vector<1x128xf32>
    %192 = arith.extf %185 : vector<128x128xbf16> to vector<128x128xf32>
    %193 = arith.truncf %162 : vector<8x128xf32> to vector<8x128xbf16>
    %cst_78 = arith.constant dense<0.000000e+00> : vector<8x128xf32>
    %194 = tpu.matmul %193, %185, %cst_78 {dimension_numbers = #tpu.dot_dimension_numbers<[1], [0], [0], [1], [0, 0, 1, 1], [], []>} : vector<8x128xbf16>, vector<128x128xbf16>, vector<8x128xf32> -> vector<8x128xf32>
    %195 = vector.broadcast %187 : vector<1x128xf32> to vector<8x128xf32>
    %196 = arith.addf %194, %195 : vector<8x128xf32>
    %197 = arith.mulf %192, %192 : vector<128x128xf32>
    %198 = arith.truncf %197 : vector<128x128xf32> to vector<128x128xbf16>
    %199 = arith.mulf %183, %183 : vector<8x128xf32>
    %200 = arith.truncf %199 : vector<8x128xf32> to vector<8x128xbf16>
    %cst_79 = arith.constant dense<0.000000e+00> : vector<8x128xf32>
    %201 = tpu.matmul %200, %198, %cst_79 {dimension_numbers = #tpu.dot_dimension_numbers<[1], [0], [0], [1], [0, 0, 1, 1], [], []>} : vector<8x128xbf16>, vector<128x128xbf16>, vector<8x128xf32> -> vector<8x128xf32>
    %cst_80 = arith.constant 0.000000e+00 : f32
    %202 = vector.broadcast %cst_80 : f32 to vector<8x128xf32>
    %203 = arith.maximumf %201, %202 : vector<8x128xf32>
    %204 = math.sqrt %203 : vector<8x128xf32>
    %cst_81 = arith.constant dense<0.000000e+00> : vector<128xf32>
    %205 = vector.multi_reduction <add>, %196, %cst_81 [0] : vector<8x128xf32> to vector<128xf32>
    %206 = vector.shape_cast %205 : vector<128xf32> to vector<1x128xf32>
    %cst_82 = arith.constant 8.000000e+00 : f32
    %207 = vector.broadcast %cst_82 : f32 to vector<1x128xf32>
    %208 = arith.divf %206, %207 : vector<1x128xf32>
    %209 = vector.broadcast %208 : vector<1x128xf32> to vector<8x128xf32>
    %210 = arith.subf %196, %209 : vector<8x128xf32>
    %211 = arith.mulf %210, %210 : vector<8x128xf32>
    %cst_83 = arith.constant dense<0.000000e+00> : vector<128xf32>
    %212 = vector.multi_reduction <add>, %211, %cst_83 [0] : vector<8x128xf32> to vector<128xf32>
    %213 = vector.shape_cast %212 : vector<128xf32> to vector<1x128xf32>
    %cst_84 = arith.constant 8.000000e+00 : f32
    %214 = vector.broadcast %cst_84 : f32 to vector<1x128xf32>
    %215 = arith.divf %213, %214 : vector<1x128xf32>
    %cst_85 = arith.constant 9.99999974E-6 : f32
    %216 = vector.broadcast %cst_85 : f32 to vector<1x128xf32>
    %217 = arith.addf %215, %216 : vector<1x128xf32>
    %218 = math.rsqrt %217 : vector<1x128xf32>
    %219 = arith.mulf %189, %218 : vector<1x128xf32>
    %220 = vector.broadcast %219 : vector<1x128xf32> to vector<8x128xf32>
    %221 = arith.mulf %210, %220 : vector<8x128xf32>
    %222 = vector.broadcast %191 : vector<1x128xf32> to vector<8x128xf32>
    %223 = arith.addf %221, %222 : vector<8x128xf32>
    %224 = vector.broadcast %219 : vector<1x128xf32> to vector<8x128xf32>
    %225 = arith.mulf %204, %224 : vector<8x128xf32>
    %cst_86 = arith.constant 9.99999996E-13 : f32
    %226 = vector.broadcast %cst_86 : f32 to vector<8x128xf32>
    %227 = arith.addf %225, %226 : vector<8x128xf32>
    %228 = arith.divf %223, %227 : vector<8x128xf32>
    %cst_87 = arith.constant -3.000000e+01 : f32
    %cst_88 = arith.constant 3.000000e+01 : f32
    %229 = vector.broadcast %cst_87 : f32 to vector<8x128xf32>
    %230 = arith.maximumf %229, %228 : vector<8x128xf32>
    %231 = vector.broadcast %cst_88 : f32 to vector<8x128xf32>
    %232 = arith.minimumf %231, %230 : vector<8x128xf32>
    %cst_89 = arith.constant -5.000000e-01 : f32
    %233 = vector.broadcast %cst_89 : f32 to vector<8x128xf32>
    %234 = arith.mulf %233, %232 : vector<8x128xf32>
    %235 = arith.mulf %234, %232 : vector<8x128xf32>
    %236 = math.exp %235 : vector<8x128xf32>
    %cst_90 = arith.constant 0.398942292 : f32
    %237 = vector.broadcast %cst_90 : f32 to vector<8x128xf32>
    %238 = arith.mulf %237, %236 : vector<8x128xf32>
    %cst_91 = arith.constant 4.471500e-02 : f32
    %239 = vector.broadcast %cst_91 : f32 to vector<8x128xf32>
    %240 = arith.mulf %239, %232 : vector<8x128xf32>
    %241 = arith.mulf %240, %232 : vector<8x128xf32>
    %242 = arith.mulf %241, %232 : vector<8x128xf32>
    %243 = arith.addf %232, %242 : vector<8x128xf32>
    %cst_92 = arith.constant 0.797884583 : f32
    %244 = vector.broadcast %cst_92 : f32 to vector<8x128xf32>
    %245 = arith.mulf %244, %243 : vector<8x128xf32>
    %246 = math.tanh %245 : vector<8x128xf32>
    %cst_93 = arith.constant 1.000000e+00 : f32
    %247 = vector.broadcast %cst_93 : f32 to vector<8x128xf32>
    %248 = arith.addf %247, %246 : vector<8x128xf32>
    %cst_94 = arith.constant 5.000000e-01 : f32
    %249 = vector.broadcast %cst_94 : f32 to vector<8x128xf32>
    %250 = arith.mulf %249, %248 : vector<8x128xf32>
    %251 = arith.mulf %223, %250 : vector<8x128xf32>
    %252 = arith.mulf %225, %238 : vector<8x128xf32>
    %253 = arith.addf %251, %252 : vector<8x128xf32>
    %254 = arith.mulf %223, %223 : vector<8x128xf32>
    %cst_95 = arith.constant 1.000000e+00 : f32
    %255 = vector.broadcast %cst_95 : f32 to vector<8x128xf32>
    %256 = arith.subf %255, %250 : vector<8x128xf32>
    %257 = arith.mulf %250, %256 : vector<8x128xf32>
    %258 = arith.mulf %254, %257 : vector<8x128xf32>
    %259 = arith.mulf %225, %225 : vector<8x128xf32>
    %260 = arith.mulf %238, %238 : vector<8x128xf32>
    %261 = arith.subf %250, %260 : vector<8x128xf32>
    %262 = arith.mulf %259, %261 : vector<8x128xf32>
    %263 = arith.addf %258, %262 : vector<8x128xf32>
    %264 = arith.mulf %223, %225 : vector<8x128xf32>
    %cst_96 = arith.constant 2.000000e+00 : f32
    %265 = vector.broadcast %cst_96 : f32 to vector<8x128xf32>
    %266 = arith.mulf %265, %250 : vector<8x128xf32>
    %cst_97 = arith.constant 1.000000e+00 : f32
    %267 = vector.broadcast %cst_97 : f32 to vector<8x128xf32>
    %268 = arith.subf %267, %266 : vector<8x128xf32>
    %269 = arith.mulf %238, %268 : vector<8x128xf32>
    %270 = arith.mulf %264, %269 : vector<8x128xf32>
    %271 = arith.addf %263, %270 : vector<8x128xf32>
    %cst_98 = arith.constant 0.000000e+00 : f32
    %272 = vector.broadcast %cst_98 : f32 to vector<8x128xf32>
    %273 = arith.maximumf %271, %272 : vector<8x128xf32>
    %274 = math.sqrt %273 : vector<8x128xf32>
    %c3 = arith.constant 3 : index
    %c0_99 = arith.constant 0 : index
    %c0_100 = arith.constant 0 : index
    %275 = vector.load %arg2[%c3, %c0_99, %c0_100] : memref<4x128x128xbf16, #tpu.memory_space<vmem>>, vector<1x128x128xbf16>
    %276 = vector.shape_cast %275 : vector<1x128x128xbf16> to vector<128x128xbf16>
    %c3_101 = arith.constant 3 : index
    %c0_102 = arith.constant 0 : index
    %c0_103 = arith.constant 0 : index
    %277 = vector.load %arg3[%c3_101, %c0_102, %c0_103] : memref<4x1x128xf32, #tpu.memory_space<vmem>>, vector<1x1x128xf32>
    %278 = vector.shape_cast %277 : vector<1x1x128xf32> to vector<1x128xf32>
    %c3_104 = arith.constant 3 : index
    %c0_105 = arith.constant 0 : index
    %c0_106 = arith.constant 0 : index
    %279 = vector.load %arg4[%c3_104, %c0_105, %c0_106] : memref<4x1x128xf32, #tpu.memory_space<vmem>>, vector<1x1x128xf32>
    %280 = vector.shape_cast %279 : vector<1x1x128xf32> to vector<1x128xf32>
    %c3_107 = arith.constant 3 : index
    %c0_108 = arith.constant 0 : index
    %c0_109 = arith.constant 0 : index
    %281 = vector.load %arg5[%c3_107, %c0_108, %c0_109] : memref<4x1x128xf32, #tpu.memory_space<vmem>>, vector<1x1x128xf32>
    %282 = vector.shape_cast %281 : vector<1x1x128xf32> to vector<1x128xf32>
    %283 = arith.extf %276 : vector<128x128xbf16> to vector<128x128xf32>
    %284 = arith.truncf %253 : vector<8x128xf32> to vector<8x128xbf16>
    %cst_110 = arith.constant dense<0.000000e+00> : vector<8x128xf32>
    %285 = tpu.matmul %284, %276, %cst_110 {dimension_numbers = #tpu.dot_dimension_numbers<[1], [0], [0], [1], [0, 0, 1, 1], [], []>} : vector<8x128xbf16>, vector<128x128xbf16>, vector<8x128xf32> -> vector<8x128xf32>
    %286 = vector.broadcast %278 : vector<1x128xf32> to vector<8x128xf32>
    %287 = arith.addf %285, %286 : vector<8x128xf32>
    %288 = arith.mulf %283, %283 : vector<128x128xf32>
    %289 = arith.truncf %288 : vector<128x128xf32> to vector<128x128xbf16>
    %290 = arith.mulf %274, %274 : vector<8x128xf32>
    %291 = arith.truncf %290 : vector<8x128xf32> to vector<8x128xbf16>
    %cst_111 = arith.constant dense<0.000000e+00> : vector<8x128xf32>
    %292 = tpu.matmul %291, %289, %cst_111 {dimension_numbers = #tpu.dot_dimension_numbers<[1], [0], [0], [1], [0, 0, 1, 1], [], []>} : vector<8x128xbf16>, vector<128x128xbf16>, vector<8x128xf32> -> vector<8x128xf32>
    %cst_112 = arith.constant 0.000000e+00 : f32
    %293 = vector.broadcast %cst_112 : f32 to vector<8x128xf32>
    %294 = arith.maximumf %292, %293 : vector<8x128xf32>
    %295 = math.sqrt %294 : vector<8x128xf32>
    %cst_113 = arith.constant dense<0.000000e+00> : vector<128xf32>
    %296 = vector.multi_reduction <add>, %287, %cst_113 [0] : vector<8x128xf32> to vector<128xf32>
    %297 = vector.shape_cast %296 : vector<128xf32> to vector<1x128xf32>
    %cst_114 = arith.constant 8.000000e+00 : f32
    %298 = vector.broadcast %cst_114 : f32 to vector<1x128xf32>
    %299 = arith.divf %297, %298 : vector<1x128xf32>
    %300 = vector.broadcast %299 : vector<1x128xf32> to vector<8x128xf32>
    %301 = arith.subf %287, %300 : vector<8x128xf32>
    %302 = arith.mulf %301, %301 : vector<8x128xf32>
    %cst_115 = arith.constant dense<0.000000e+00> : vector<128xf32>
    %303 = vector.multi_reduction <add>, %302, %cst_115 [0] : vector<8x128xf32> to vector<128xf32>
    %304 = vector.shape_cast %303 : vector<128xf32> to vector<1x128xf32>
    %cst_116 = arith.constant 8.000000e+00 : f32
    %305 = vector.broadcast %cst_116 : f32 to vector<1x128xf32>
    %306 = arith.divf %304, %305 : vector<1x128xf32>
    %cst_117 = arith.constant 9.99999974E-6 : f32
    %307 = vector.broadcast %cst_117 : f32 to vector<1x128xf32>
    %308 = arith.addf %306, %307 : vector<1x128xf32>
    %309 = math.rsqrt %308 : vector<1x128xf32>
    %310 = arith.mulf %280, %309 : vector<1x128xf32>
    %311 = vector.broadcast %310 : vector<1x128xf32> to vector<8x128xf32>
    %312 = arith.mulf %301, %311 : vector<8x128xf32>
    %313 = vector.broadcast %282 : vector<1x128xf32> to vector<8x128xf32>
    %314 = arith.addf %312, %313 : vector<8x128xf32>
    %315 = vector.broadcast %310 : vector<1x128xf32> to vector<8x128xf32>
    %316 = arith.mulf %295, %315 : vector<8x128xf32>
    %cst_118 = arith.constant 9.99999996E-13 : f32
    %317 = vector.broadcast %cst_118 : f32 to vector<8x128xf32>
    %318 = arith.addf %316, %317 : vector<8x128xf32>
    %319 = arith.divf %314, %318 : vector<8x128xf32>
    %cst_119 = arith.constant -3.000000e+01 : f32
    %cst_120 = arith.constant 3.000000e+01 : f32
    %320 = vector.broadcast %cst_119 : f32 to vector<8x128xf32>
    %321 = arith.maximumf %320, %319 : vector<8x128xf32>
    %322 = vector.broadcast %cst_120 : f32 to vector<8x128xf32>
    %323 = arith.minimumf %322, %321 : vector<8x128xf32>
    %cst_121 = arith.constant -5.000000e-01 : f32
    %324 = vector.broadcast %cst_121 : f32 to vector<8x128xf32>
    %325 = arith.mulf %324, %323 : vector<8x128xf32>
    %326 = arith.mulf %325, %323 : vector<8x128xf32>
    %327 = math.exp %326 : vector<8x128xf32>
    %cst_122 = arith.constant 0.398942292 : f32
    %328 = vector.broadcast %cst_122 : f32 to vector<8x128xf32>
    %329 = arith.mulf %328, %327 : vector<8x128xf32>
    %cst_123 = arith.constant 4.471500e-02 : f32
    %330 = vector.broadcast %cst_123 : f32 to vector<8x128xf32>
    %331 = arith.mulf %330, %323 : vector<8x128xf32>
    %332 = arith.mulf %331, %323 : vector<8x128xf32>
    %333 = arith.mulf %332, %323 : vector<8x128xf32>
    %334 = arith.addf %323, %333 : vector<8x128xf32>
    %cst_124 = arith.constant 0.797884583 : f32
    %335 = vector.broadcast %cst_124 : f32 to vector<8x128xf32>
    %336 = arith.mulf %335, %334 : vector<8x128xf32>
    %337 = math.tanh %336 : vector<8x128xf32>
    %cst_125 = arith.constant 1.000000e+00 : f32
    %338 = vector.broadcast %cst_125 : f32 to vector<8x128xf32>
    %339 = arith.addf %338, %337 : vector<8x128xf32>
    %cst_126 = arith.constant 5.000000e-01 : f32
    %340 = vector.broadcast %cst_126 : f32 to vector<8x128xf32>
    %341 = arith.mulf %340, %339 : vector<8x128xf32>
    %342 = arith.mulf %314, %341 : vector<8x128xf32>
    %343 = arith.mulf %316, %329 : vector<8x128xf32>
    %344 = arith.addf %342, %343 : vector<8x128xf32>
    %345 = arith.mulf %314, %314 : vector<8x128xf32>
    %cst_127 = arith.constant 1.000000e+00 : f32
    %346 = vector.broadcast %cst_127 : f32 to vector<8x128xf32>
    %347 = arith.subf %346, %341 : vector<8x128xf32>
    %348 = arith.mulf %341, %347 : vector<8x128xf32>
    %349 = arith.mulf %345, %348 : vector<8x128xf32>
    %350 = arith.mulf %316, %316 : vector<8x128xf32>
    %351 = arith.mulf %329, %329 : vector<8x128xf32>
    %352 = arith.subf %341, %351 : vector<8x128xf32>
    %353 = arith.mulf %350, %352 : vector<8x128xf32>
    %354 = arith.addf %349, %353 : vector<8x128xf32>
    %355 = arith.mulf %314, %316 : vector<8x128xf32>
    %cst_128 = arith.constant 2.000000e+00 : f32
    %356 = vector.broadcast %cst_128 : f32 to vector<8x128xf32>
    %357 = arith.mulf %356, %341 : vector<8x128xf32>
    %cst_129 = arith.constant 1.000000e+00 : f32
    %358 = vector.broadcast %cst_129 : f32 to vector<8x128xf32>
    %359 = arith.subf %358, %357 : vector<8x128xf32>
    %360 = arith.mulf %329, %359 : vector<8x128xf32>
    %361 = arith.mulf %355, %360 : vector<8x128xf32>
    %362 = arith.addf %354, %361 : vector<8x128xf32>
    %cst_130 = arith.constant 0.000000e+00 : f32
    %363 = vector.broadcast %cst_130 : f32 to vector<8x128xf32>
    %364 = arith.maximumf %362, %363 : vector<8x128xf32>
    %365 = math.sqrt %364 : vector<8x128xf32>
    %c0_131 = arith.constant 0 : index
    %c0_132 = arith.constant 0 : index
    %366 = vector.load %arg6[%c0_131, %c0_132] : memref<8x128xf32, #tpu.memory_space<vmem>>, vector<8x128xf32>
    tpu.vector_store %arg6[%c0_131, %c0_132], %344 {strides = array<i32>} : memref<8x128xf32, #tpu.memory_space<vmem>>, vector<8x128xf32>,
    %c0_133 = arith.constant 0 : index
    %c0_134 = arith.constant 0 : index
    %367 = vector.load %arg7[%c0_133, %c0_134] : memref<8x128xf32, #tpu.memory_space<vmem>>, vector<8x128xf32>
    tpu.vector_store %arg7[%c0_133, %c0_134], %365 {strides = array<i32>} : memref<8x128xf32, #tpu.memory_space<vmem>>, vector<8x128xf32>,
    return
  }
}

</mosaic_0001>

<llo_original>
// kernel: monet_forward.1
$region0: #{monet_forward.1}
  #allocation0 [shape = 'u32[]', space=smem, size = 0x4, offset = 0x4, fixed_abs, tag = 'smem constant byte address 0x4 - core index']
  #allocation1 [shape = 'u32[144,128]{1,0:T(1,128)}', space=vmem, size = 0x12000, scoped, tag = 'internal scratch']
  %s0 = inlined_call_operand.vmem [shape: f32[8,128], index: 0, kind: input, shape index: {}]
  %s1 = inlined_call_operand.vmem [shape: f32[8,128], index: 1, kind: input, shape index: {}]
  %s2 = inlined_call_operand.vmem [shape: bf16[4,128,128], index: 2, kind: input, shape index: {}]
  %s3 = inlined_call_operand.vmem [shape: f32[4,1,128], index: 3, kind: input, shape index: {}]
  %s4 = inlined_call_operand.vmem [shape: f32[4,1,128], index: 4, kind: input, shape index: {}]
  %s5 = inlined_call_operand.vmem [shape: f32[4,1,128], index: 5, kind: input, shape index: {}]
  %s6 = inlined_call_operand.vmem [shape: f32[8,128], index: 6, kind: output, shape index: {0}]
  %s7 = inlined_call_operand.vmem [shape: f32[8,128], index: 7, kind: output, shape index: {1}]
  %8 = xla_tuple %s6, %s7
  %s9 = sld [smem:[#allocation0]]
  $region42: #{monet_forward.1} parent=0
    _
  %s11 = ssub.s32 1, %s9
  %s12 = scalar_select 0, %s11, %s9
  // Predicated region
  $region2: #{monet_forward.1} parent=0 // pred_check
    _
  $region3: #{monet_forward.1} parent=0 // pred_check_branch
    %14 = sbr.rel (0) target = $region5
  $region4: #{monet_forward.1} parent=0 // pred_region
    _
  $region5: #{monet_forward.1} parent=0 // pred_fallthru
    _
  // Predicated region
  $region6: #{monet_forward.1} parent=0 // pred_check
    _
  $region7: #{monet_forward.1} parent=0 // pred_check_branch
    %16 = sbr.rel (0) target = $region9
  $region8: #{monet_forward.1} parent=0 // pred_region
    _
  $region9: #{monet_forward.1} parent=0 // pred_fallthru
    _
  // Predicated region
  $region10: #{monet_forward.1} parent=0 // pred_check
    _
  $region11: #{monet_forward.1} parent=0 // pred_check_branch
    %18 = sbr.rel (0) target = $region13
  $region12: #{monet_forward.1} parent=0 // pred_region
    _
  $region13: #{monet_forward.1} parent=0 // pred_fallthru
    _
  // Predicated region
  $region14: #{monet_forward.1} parent=0 // pred_check
    _
  $region15: #{monet_forward.1} parent=0 // pred_check_branch
    %20 = sbr.rel (0) target = $region17
  $region16: #{monet_forward.1} parent=0 // pred_region
    _
  $region17: #{monet_forward.1} parent=0 // pred_fallthru
    _
  // Predicated region
  $region18: #{monet_forward.1} parent=0 // pred_check
    _
  $region19: #{monet_forward.1} parent=0 // pred_check_branch
    %22 = sbr.rel (0) target = $region21
  $region20: #{monet_forward.1} parent=0 // pred_region
    _
  $region21: #{monet_forward.1} parent=0 // pred_fallthru
    _
  // Predicated region
  $region22: #{monet_forward.1} parent=0 // pred_check
    _
  $region23: #{monet_forward.1} parent=0 // pred_check_branch
    %24 = sbr.rel (0) target = $region25
  $region24: #{monet_forward.1} parent=0 // pred_region
    _
  $region25: #{monet_forward.1} parent=0 // pred_fallthru
    _
  %v26 = vld [vmem:[%s0] sm:$0xff]
  %v27 = vld [vmem:[%s1] sm:$0xff]
  %v28 = vld [vmem:[%s2] sm:$0xf]
  %v29 = vld [vmem:[%s2 + $0x4] sm:$0xf]
  %v30 = vld [vmem:[%s2 + $0x8] sm:$0xf]
  %v31 = vld [vmem:[%s2 + $0xc] sm:$0xf]
  %v32 = vld [vmem:[%s2 + $0x10] sm:$0xf]
  %v33 = vld [vmem:[%s2 + $0x14] sm:$0xf]
  %v34 = vld [vmem:[%s2 + $0x18] sm:$0xf]
  %v35 = vld [vmem:[%s2 + $0x1c] sm:$0xf]
  %v36 = vld [vmem:[%s2 + $0x20] sm:$0xf]
  %v37 = vld [vmem:[%s2 + $0x24] sm:$0xf]
  %v38 = vld [vmem:[%s2 + $0x28] sm:$0xf]
  %v39 = vld [vmem:[%s2 + $0x2c] sm:$0xf]
  %v40 = vld [vmem:[%s2 + $0x30] sm:$0xf]
  %v41 = vld [vmem:[%s2 + $0x34] sm:$0xf]
  %v42 = vld [vmem:[%s2 + $0x38] sm:$0xf]
  %v43 = vld [vmem:[%s2 + $0x3c] sm:$0xf]
  %v44 = vld [vmem:[%s3] sm:$0x1]
  %v45 = vld [vmem:[%s4] sm:$0x1]
  %v46 = vld [vmem:[%s5] sm:$0x1]
  %v47 = vunpack.c.l.bf16 %v28
  %v48 = vunpack.c.l.bf16 %v29
  %v49 = vunpack.c.l.bf16 %v30
  %v50 = vunpack.c.l.bf16 %v31
  %v51 = vunpack.c.l.bf16 %v32
  %v52 = vunpack.c.l.bf16 %v33
  %v53 = vunpack.c.l.bf16 %v34
  %v54 = vunpack.c.l.bf16 %v35
  %v55 = vunpack.c.l.bf16 %v36
  %v56 = vunpack.c.l.bf16 %v37
  %v57 = vunpack.c.l.bf16 %v38
  %v58 = vunpack.c.l.bf16 %v39
  %v59 = vunpack.c.l.bf16 %v40
  %v60 = vunpack.c.l.bf16 %v41
  %v61 = vunpack.c.l.bf16 %v42
  %v62 = vunpack.c.l.bf16 %v43
  %v63 = vpack.c.bf16 %v26, %v26
  %v65 = vlaneseq
  %v66 = vshrl.u32 %v65, 7
  %v67 = vsub.s32 0, %v66
  %v68 = vrot.slane %v44, %v67
  %v86 = vunpack.c.l.b16 %v28
  %v87 = vunpack.c.l.b16 %v29
  %v88 = vunpack.c.l.b16 %v30
  %v89 = vunpack.c.l.b16 %v31
  %v90 = vunpack.c.l.b16 %v32
  %v91 = vunpack.c.l.b16 %v33
  %v92 = vunpack.c.l.b16 %v34
  %v93 = vunpack.c.l.b16 %v35
  %v94 = vunpack.c.l.b16 %v36
  %v95 = vunpack.c.l.b16 %v37
  %v96 = vunpack.c.l.b16 %v38
  %v97 = vunpack.c.l.b16 %v39
  %v98 = vunpack.c.l.b16 %v40
  %v99 = vunpack.c.l.b16 %v41
  %v100 = vunpack.c.l.b16 %v42
  %v101 = vunpack.c.l.b16 %v43
  %v102 = vpack.c.b16 %v87, %v86
  %v103 = vpack.c.b16 %v89, %v88
  %v104 = vpack.c.b16 %v91, %v90
  %v105 = vpack.c.b16 %v93, %v92
  %v106 = vpack.c.b16 %v95, %v94
  %v107 = vpack.c.b16 %v97, %v96
  %v108 = vpack.c.b16 %v99, %v98
  %v109 = vpack.c.b16 %v101, %v100
  %118 = vmatprep.subr.bf16.mxu0 0
  %119 = vmatpush1.bf16.msra.mxu0 %v102
  %120 = vmatprep.subr.bf16.mxu0 0
  %121 = vmatpush1.bf16.msra.mxu0 %v103
  %122 = vmatprep.subr.bf16.mxu0 0
  %123 = vmatpush1.bf16.msra.mxu0 %v104
  %124 = vmatprep.subr.bf16.mxu0 0
  %125 = vmatpush1.bf16.msra.mxu0 %v105
  %126 = vmatprep.subr.bf16.mxu0 0
  %127 = vmatpush1.bf16.msra.mxu0 %v106
  %128 = vmatprep.subr.bf16.mxu0 0
  %129 = vmatpush1.bf16.msra.mxu0 %v107
  %130 = vmatprep.subr.bf16.mxu0 0
  %131 = vmatpush1.bf16.msra.mxu0 %v108
  %132 = vmatprep.subr.bf16.mxu0 0
  %133 = vmatpush1.bf16.msra.mxu0 %v109
  %134 = vmatprep.subr.bf16.mxu0 0
  %135 = vmatpush1.bf16.msra.mxu0 0
  %136 = vmatprep.subr.bf16.mxu0 0
  %137 = vmatpush1.bf16.msra.mxu0 0
  %138 = vmatprep.subr.bf16.mxu0 0
  %139 = vmatpush1.bf16.msra.mxu0 0
  %140 = vmatprep.subr.bf16.mxu0 0
  %141 = vmatpush1.bf16.msra.mxu0 0
  %142 = vmatprep.subr.bf16.mxu0 0
  %143 = vmatpush1.bf16.msra.mxu0 0
  %144 = vmatprep.subr.bf16.mxu0 0
  %145 = vmatpush1.bf16.msra.mxu0 0
  %146 = vmatprep.subr.bf16.mxu0 0
  %147 = vmatpush1.bf16.msra.mxu0 0
  %148 = vmatprep.subr.bf16.mxu0 0
  %149 = vmatpush1.bf16.msra.mxu0 0
  %150 = vmatprep.mubr.bf16.mxu0 0
  %151 = vmatmul.mubr.bf16.gmra.mrb[0].mxu0 %v63
  %v152 = vpop.f32.mrb[0].mxu0
  %v153 = vadd.f32 %v68, %v152
  %v154 = vpop.f32.mrb[0].mxu0
  %v155 = vpop.f32.mrb[0].mxu0
  %v156 = vpop.f32.mrb[0].mxu0
  %157 = vdwg.mxu0
  %v158 = vmul.f32 %v47, %v47
  %v159 = vmul.f32 %v48, %v48
  %v160 = vmul.f32 %v49, %v49
  %v161 = vmul.f32 %v50, %v50
  %v162 = vmul.f32 %v51, %v51
  %v163 = vmul.f32 %v52, %v52
  %v164 = vmul.f32 %v53, %v53
  %v165 = vmul.f32 %v54, %v54
  %v166 = vmul.f32 %v55, %v55
  %v167 = vmul.f32 %v56, %v56
  %v168 = vmul.f32 %v57, %v57
  %v169 = vmul.f32 %v58, %v58
  %v170 = vmul.f32 %v59, %v59
  %v171 = vmul.f32 %v60, %v60
  %v172 = vmul.f32 %v61, %v61
  %v173 = vmul.f32 %v62, %v62
  %v174 = vpack.c.bf16 %v159, %v158
  %v175 = vpack.c.bf16 %v161, %v160
  %v176 = vpack.c.bf16 %v163, %v162
  %v177 = vpack.c.bf16 %v165, %v164
  %v178 = vpack.c.bf16 %v167, %v166
  %v179 = vpack.c.bf16 %v169, %v168
  %v180 = vpack.c.bf16 %v171, %v170
  %v181 = vpack.c.bf16 %v173, %v172
  %v182 = vmul.f32 %v27, %v27
  %v183 = vpack.c.bf16 %v182, %v182
  %184 = vmatprep.subr.bf16.mxu0 0
  %185 = vmatpush1.bf16.msra.mxu0 %v174
  %186 = vmatprep.subr.bf16.mxu0 0
  %187 = vmatpush1.bf16.msra.mxu0 %v175
  %188 = vmatprep.subr.bf16.mxu0 0
  %189 = vmatpush1.bf16.msra.mxu0 %v176
  %190 = vmatprep.subr.bf16.mxu0 0
  %191 = vmatpush1.bf16.msra.mxu0 %v177
  %192 = vmatprep.subr.bf16.mxu0 0
  %193 = vmatpush1.bf16.msra.mxu0 %v178
  %194 = vmatprep.subr.bf16.mxu0 0
  %195 = vmatpush1.bf16.msra.mxu0 %v179
  %196 = vmatprep.subr.bf16.mxu0 0
  %197 = vmatpush1.bf16.msra.mxu0 %v180
  %198 = vmatprep.subr.bf16.mxu0 0
  %199 = vmatpush1.bf16.msra.mxu0 %v181
  %200 = vmatprep.subr.bf16.mxu0 0
  %201 = vmatpush1.bf16.msra.mxu0 0
  %202 = vmatprep.subr.bf16.mxu0 0
  %203 = vmatpush1.bf16.msra.mxu0 0
  %204 = vmatprep.subr.bf16.mxu0 0
  %205 = vmatpush1.bf16.msra.mxu0 0
  %206 = vmatprep.subr.bf16.mxu0 0
  %207 = vmatpush1.bf16.msra.mxu0 0
  %208 = vmatprep.subr.bf16.mxu0 0
  %209 = vmatpush1.bf16.msra.mxu0 0
  %210 = vmatprep.subr.bf16.mxu0 0
  %211 = vmatpush1.bf16.msra.mxu0 0
  %212 = vmatprep.subr.bf16.mxu0 0
  %213 = vmatpush1.bf16.msra.mxu0 0
  %214 = vmatprep.subr.bf16.mxu0 0
  %215 = vmatpush1.bf16.msra.mxu0 0
  %216 = vmatprep.mubr.bf16.mxu0 0
  %217 = vmatmul.mubr.bf16.gmra.mrb[0].mxu0 %v183
  %v218 = vpop.f32.mrb[0].mxu0
  %v219 = vadd.f32 0.0, %v218
  %v220 = vpop.f32.mrb[0].mxu0
  %v221 = vpop.f32.mrb[0].mxu0
  %v222 = vpop.f32.mrb[0].mxu0
  %223 = vdwg.mxu0
  %v224 = vmax.f32 %v219, 0.0
  %v225 = vrsqrt.pop %v224
  %v226 = vmul.f32 %v224, %v225
  %vm227 = vcmp.eq.f32.partialorder %v224, inf
  %v228 = vsel %vm227, %v224, %v226
  %vm229 = vcmp.eq.f32.partialorder %v224, 0.0
  %v230 = vand.u32 %v224, 2147483648
  %v231 = vsel %vm229, %v230, %v228
  %v232 = vrot.slane %v153, 4
  %v233 = vadd.f32 %v153, %v232
  %v234 = vrot.slane %v233, 2
  %v235 = vadd.f32 %v233, %v234
  %v236 = vrot.slane %v235, 1
  %v237 = vadd.f32 %v235, %v236
  %v238 = vrcp.pop 8.0
  %v239 = vmul.f32 %v237, %v238
  %v240 = vsub.f32 %v153, %v239
  %v241 = vmul.f32 %v240, %v240
  %v242 = vrot.slane %v241, 4
  %v243 = vadd.f32 %v241, %v242
  %v244 = vrot.slane %v243, 2
  %v245 = vadd.f32 %v243, %v244
  %v246 = vrot.slane %v245, 1
  %v247 = vadd.f32 %v245, %v246
  %v248 = vmul.f32 %v247, %v238
  %v249 = vadd.f32 %v248, 1e-05
  %v250 = vrsqrt.pop %v249
  %v251 = vmul.f32 %v45, %v250
  %v253 = vlaneseq
  %v254 = vshrl.u32 %v253, 7
  %v255 = vsub.s32 0, %v254
  %v256 = vrot.slane %v251, %v255
  %v258 = vmul.f32 %v240, %v256
  %v260 = vlaneseq
  %v261 = vshrl.u32 %v260, 7
  %v262 = vsub.s32 0, %v261
  %v263 = vrot.slane %v46, %v262
  %v265 = vadd.f32 %v258, %v263
  %v266 = vmul.f32 %v231, %v256
  %v267 = vadd.f32 %v266, 1e-12
  %v268 = vrcp.pop %v267
  %v269 = vmul.f32 %v265, %v268
  %v270 = vmax.f32 %v269, -30.0
  %v271 = vmin.f32 %v270, 30.0
  %v272 = vmul.f32 %v271, -0.5
  %v273 = vmul.f32 %v272, %v271
  %v274 = vmul.f32 %v273, 1.442695
  %v275 = vpow.pop %v274
  %v276 = vmul.f32 %v275, 0.3989423
  %v277 = vmul.f32 %v271, 0.044715
  %v278 = vmul.f32 %v277, %v271
  %v279 = vmul.f32 %v278, %v271
  %v280 = vadd.f32 %v271, %v279
  %v281 = vmul.f32 %v280, 0.7978846
  %v282 = vtanh.pop %v281
  %v283 = vadd.f32 %v282, 1.0
  %v284 = vmul.f32 %v283, 0.5
  %v285 = vmul.f32 %v265, %v284
  %v286 = vmul.f32 %v266, %v276
  %v287 = vadd.f32 %v285, %v286
  %v288 = vmul.f32 %v265, %v265
  %v289 = vsub.f32 1.0, %v284
  %v290 = vmul.f32 %v284, %v289
  %v291 = vmul.f32 %v288, %v290
  %v292 = vmul.f32 %v266, %v266
  %v293 = vmul.f32 %v276, %v276
  %v294 = vsub.f32 %v284, %v293
  %v295 = vmul.f32 %v292, %v294
  %v296 = vadd.f32 %v291, %v295
  %v297 = vmul.f32 %v265, %v266
  %v298 = vmul.f32 %v284, 2.0
  %v299 = vsub.f32 1.0, %v298
  %v300 = vmul.f32 %v276, %v299
  %v301 = vmul.f32 %v297, %v300
  %v302 = vadd.f32 %v296, %v301
  %v303 = vmax.f32 %v302, 0.0
  %v304 = vrsqrt.pop %v303
  %v305 = vmul.f32 %v303, %v304
  %vm306 = vcmp.eq.f32.partialorder %v303, inf
  %v307 = vsel %vm306, %v303, %v305
  %vm308 = vcmp.eq.f32.partialorder %v303, 0.0
  %v309 = vand.u32 %v303, 2147483648
  %v310 = vsel %vm308, %v309, %v307
  %s311 = scalar_lea.vmem %s2, 64
  %v312 = vld [vmem:[%s311] sm:$0xf]
  %v313 = vld [vmem:[%s311 + $0x4] sm:$0xf]
  %v314 = vld [vmem:[%s311 + $0x8] sm:$0xf]
  %v315 = vld [vmem:[%s311 + $0xc] sm:$0xf]
  %v316 = vld [vmem:[%s311 + $0x10] sm:$0xf]
  %v317 = vld [vmem:[%s311 + $0x14] sm:$0xf]
  %v318 = vld [vmem:[%s311 + $0x18] sm:$0xf]
  %v319 = vld [vmem:[%s311 + $0x1c] sm:$0xf]
  %v320 = vld [vmem:[%s311 + $0x20] sm:$0xf]
  %v321 = vld [vmem:[%s311 + $0x24] sm:$0xf]
  %v322 = vld [vmem:[%s311 + $0x28] sm:$0xf]
  %v323 = vld [vmem:[%s311 + $0x2c] sm:$0xf]
  %v324 = vld [vmem:[%s311 + $0x30] sm:$0xf]
  %v325 = vld [vmem:[%s311 + $0x34] sm:$0xf]
  %v326 = vld [vmem:[%s311 + $0x38] sm:$0xf]
  %v327 = vld [vmem:[%s311 + $0x3c] sm:$0xf]
  %s328 = scalar_lea.vmem %s3, 1
  %v329 = vld [vmem:[%s328] sm:$0x1]
  %s330 = scalar_lea.vmem %s4, 1
  %v331 = vld [vmem:[%s330] sm:$0x1]
  %s332 = scalar_lea.vmem %s5, 1
  %v333 = vld [vmem:[%s332] sm:$0x1]
  %v334 = vunpack.c.l.bf16 %v312
  %v335 = vunpack.c.l.bf16 %v313
  %v336 = vunpack.c.l.bf16 %v314
  %v337 = vunpack.c.l.bf16 %v315
  %v338 = vunpack.c.l.bf16 %v316
  %v339 = vunpack.c.l.bf16 %v317
  %v340 = vunpack.c.l.bf16 %v318
  %v341 = vunpack.c.l.bf16 %v319
  %v342 = vunpack.c.l.bf16 %v320
  %v343 = vunpack.c.l.bf16 %v321
  %v344 = vunpack.c.l.bf16 %v322
  %v345 = vunpack.c.l.bf16 %v323
  %v346 = vunpack.c.l.bf16 %v324
  %v347 = vunpack.c.l.bf16 %v325
  %v348 = vunpack.c.l.bf16 %v326
  %v349 = vunpack.c.l.bf16 %v327
  %v350 = vpack.c.bf16 %v287, %v287
  %v352 = vlaneseq
  %v353 = vshrl.u32 %v352, 7
  %v354 = vsub.s32 0, %v353
  %v355 = vrot.slane %v329, %v354
  %v373 = vunpack.c.l.b16 %v312
  %v374 = vunpack.c.l.b16 %v313
  %v375 = vunpack.c.l.b16 %v314
  %v376 = vunpack.c.l.b16 %v315
  %v377 = vunpack.c.l.b16 %v316
  %v378 = vunpack.c.l.b16 %v317
  %v379 = vunpack.c.l.b16 %v318
  %v380 = vunpack.c.l.b16 %v319
  %v381 = vunpack.c.l.b16 %v320
  %v382 = vunpack.c.l.b16 %v321
  %v383 = vunpack.c.l.b16 %v322
  %v384 = vunpack.c.l.b16 %v323
  %v385 = vunpack.c.l.b16 %v324
  %v386 = vunpack.c.l.b16 %v325
  %v387 = vunpack.c.l.b16 %v326
  %v388 = vunpack.c.l.b16 %v327
  %v389 = vpack.c.b16 %v374, %v373
  %v390 = vpack.c.b16 %v376, %v375
  %v391 = vpack.c.b16 %v378, %v377
  %v392 = vpack.c.b16 %v380, %v379
  %v393 = vpack.c.b16 %v382, %v381
  %v394 = vpack.c.b16 %v384, %v383
  %v395 = vpack.c.b16 %v386, %v385
  %v396 = vpack.c.b16 %v388, %v387
  %405 = vmatprep.subr.bf16.mxu0 0
  %406 = vmatpush1.bf16.msra.mxu0 %v389
  %407 = vmatprep.subr.bf16.mxu0 0
  %408 = vmatpush1.bf16.msra.mxu0 %v390
  %409 = vmatprep.subr.bf16.mxu0 0
  %410 = vmatpush1.bf16.msra.mxu0 %v391
  %411 = vmatprep.subr.bf16.mxu0 0
  %412 = vmatpush1.bf16.msra.mxu0 %v392
  %413 = vmatprep.subr.bf16.mxu0 0
  %414 = vmatpush1.bf16.msra.mxu0 %v393
  %415 = vmatprep.subr.bf16.mxu0 0
  %416 = vmatpush1.bf16.msra.mxu0 %v394
  %417 = vmatprep.subr.bf16.mxu0 0
  %418 = vmatpush1.bf16.msra.mxu0 %v395
  %419 = vmatprep.subr.bf16.mxu0 0
  %420 = vmatpush1.bf16.msra.mxu0 %v396
  %421 = vmatprep.subr.bf16.mxu0 0
  %422 = vmatpush1.bf16.msra.mxu0 0
  %423 = vmatprep.subr.bf16.mxu0 0
  %424 = vmatpush1.bf16.msra.mxu0 0
  %425 = vmatprep.subr.bf16.mxu0 0
  %426 = vmatpush1.bf16.msra.mxu0 0
  %427 = vmatprep.subr.bf16.mxu0 0
  %428 = vmatpush1.bf16.msra.mxu0 0
  %429 = vmatprep.subr.bf16.mxu0 0
  %430 = vmatpush1.bf16.msra.mxu0 0
  %431 = vmatprep.subr.bf16.mxu0 0
  %432 = vmatpush1.bf16.msra.mxu0 0
  %433 = vmatprep.subr.bf16.mxu0 0
  %434 = vmatpush1.bf16.msra.mxu0 0
  %435 = vmatprep.subr.bf16.mxu0 0
  %436 = vmatpush1.bf16.msra.mxu0 0
  %437 = vmatprep.mubr.bf16.mxu0 0
  %438 = vmatmul.mubr.bf16.gmra.mrb[0].mxu0 %v350
  %v439 = vpop.f32.mrb[0].mxu0
  %v440 = vadd.f32 %v355, %v439
  %v441 = vpop.f32.mrb[0].mxu0
  %v442 = vpop.f32.mrb[0].mxu0
  %v443 = vpop.f32.mrb[0].mxu0
  %444 = vdwg.mxu0
  %v445 = vmul.f32 %v334, %v334
  %v446 = vmul.f32 %v335, %v335
  %v447 = vmul.f32 %v336, %v336
  %v448 = vmul.f32 %v337, %v337
  %v449 = vmul.f32 %v338, %v338
  %v450 = vmul.f32 %v339, %v339
  %v451 = vmul.f32 %v340, %v340
  %v452 = vmul.f32 %v341, %v341
  %v453 = vmul.f32 %v342, %v342
  %v454 = vmul.f32 %v343, %v343
  %v455 = vmul.f32 %v344, %v344
  %v456 = vmul.f32 %v345, %v345
  %v457 = vmul.f32 %v346, %v346
  %v458 = vmul.f32 %v347, %v347
  %v459 = vmul.f32 %v348, %v348
  %v460 = vmul.f32 %v349, %v349
  %v461 = vpack.c.bf16 %v446, %v445
  %v462 = vpack.c.bf16 %v448, %v447
  %v463 = vpack.c.bf16 %v450, %v449
  %v464 = vpack.c.bf16 %v452, %v451
  %v465 = vpack.c.bf16 %v454, %v453
  %v466 = vpack.c.bf16 %v456, %v455
  %v467 = vpack.c.bf16 %v458, %v457
  %v468 = vpack.c.bf16 %v460, %v459
  %v469 = vmul.f32 %v310, %v310
  %v470 = vpack.c.bf16 %v469, %v469
  %471 = vmatprep.subr.bf16.mxu0 0
  %472 = vmatpush1.bf16.msra.mxu0 %v461
  %473 = vmatprep.subr.bf16.mxu0 0
  %474 = vmatpush1.bf16.msra.mxu0 %v462
  %475 = vmatprep.subr.bf16.mxu0 0
  %476 = vmatpush1.bf16.msra.mxu0 %v463
  %477 = vmatprep.subr.bf16.mxu0 0
  %478 = vmatpush1.bf16.msra.mxu0 %v464
  %479 = vmatprep.subr.bf16.mxu0 0
  %480 = vmatpush1.bf16.msra.mxu0 %v465
  %481 = vmatprep.subr.bf16.mxu0 0
  %482 = vmatpush1.bf16.msra.mxu0 %v466
  %483 = vmatprep.subr.bf16.mxu0 0
  %484 = vmatpush1.bf16.msra.mxu0 %v467
  %485 = vmatprep.subr.bf16.mxu0 0
  %486 = vmatpush1.bf16.msra.mxu0 %v468
  %487 = vmatprep.subr.bf16.mxu0 0
  %488 = vmatpush1.bf16.msra.mxu0 0
  %489 = vmatprep.subr.bf16.mxu0 0
  %490 = vmatpush1.bf16.msra.mxu0 0
  %491 = vmatprep.subr.bf16.mxu0 0
  %492 = vmatpush1.bf16.msra.mxu0 0
  %493 = vmatprep.subr.bf16.mxu0 0
  %494 = vmatpush1.bf16.msra.mxu0 0
  %495 = vmatprep.subr.bf16.mxu0 0
  %496 = vmatpush1.bf16.msra.mxu0 0
  %497 = vmatprep.subr.bf16.mxu0 0
  %498 = vmatpush1.bf16.msra.mxu0 0
  %499 = vmatprep.subr.bf16.mxu0 0
  %500 = vmatpush1.bf16.msra.mxu0 0
  %501 = vmatprep.subr.bf16.mxu0 0
  %502 = vmatpush1.bf16.msra.mxu0 0
  %503 = vmatprep.mubr.bf16.mxu0 0
  %504 = vmatmul.mubr.bf16.gmra.mrb[0].mxu0 %v470
  %v505 = vpop.f32.mrb[0].mxu0
  %v506 = vadd.f32 0.0, %v505
  %v507 = vpop.f32.mrb[0].mxu0
  %v508 = vpop.f32.mrb[0].mxu0
  %v509 = vpop.f32.mrb[0].mxu0
  %510 = vdwg.mxu0
  %v511 = vmax.f32 %v506, 0.0
  %v512 = vrsqrt.pop %v511
  %v513 = vmul.f32 %v511, %v512
  %vm514 = vcmp.eq.f32.partialorder %v511, inf
  %v515 = vsel %vm514, %v511, %v513
  %vm516 = vcmp.eq.f32.partialorder %v511, 0.0
  %v517 = vand.u32 %v511, 2147483648
  %v518 = vsel %vm516, %v517, %v515
  %v519 = vrot.slane %v440, 4
  %v520 = vadd.f32 %v440, %v519
  %v521 = vrot.slane %v520, 2
  %v522 = vadd.f32 %v520, %v521
  %v523 = vrot.slane %v522, 1
  %v524 = vadd.f32 %v522, %v523
  %v525 = vmul.f32 %v524, %v238
  %v526 = vsub.f32 %v440, %v525
  %v527 = vmul.f32 %v526, %v526
  %v528 = vrot.slane %v527, 4
  %v529 = vadd.f32 %v527, %v528
  %v530 = vrot.slane %v529, 2
  %v531 = vadd.f32 %v529, %v530
  %v532 = vrot.slane %v531, 1
  %v533 = vadd.f32 %v531, %v532
  %v534 = vmul.f32 %v533, %v238
  %v535 = vadd.f32 %v534, 1e-05
  %v536 = vrsqrt.pop %v535
  %v537 = vmul.f32 %v331, %v536
  %v539 = vlaneseq
  %v540 = vshrl.u32 %v539, 7
  %v541 = vsub.s32 0, %v540
  %v542 = vrot.slane %v537, %v541
  %v544 = vmul.f32 %v526, %v542
  %v546 = vlaneseq
  %v547 = vshrl.u32 %v546, 7
  %v548 = vsub.s32 0, %v547
  %v549 = vrot.slane %v333, %v548
  %v551 = vadd.f32 %v544, %v549
  %v552 = vmul.f32 %v518, %v542
  %v553 = vadd.f32 %v552, 1e-12
  %v554 = vrcp.pop %v553
  %v555 = vmul.f32 %v551, %v554
  %v556 = vmax.f32 %v555, -30.0
  %v557 = vmin.f32 %v556, 30.0
  %v558 = vmul.f32 %v557, -0.5
  %v559 = vmul.f32 %v558, %v557
  %v560 = vmul.f32 %v559, 1.442695
  %v561 = vpow.pop %v560
  %v562 = vmul.f32 %v561, 0.3989423
  %v563 = vmul.f32 %v557, 0.044715
  %v564 = vmul.f32 %v563, %v557
  %v565 = vmul.f32 %v564, %v557
  %v566 = vadd.f32 %v557, %v565
  %v567 = vmul.f32 %v566, 0.7978846
  %v568 = vtanh.pop %v567
  %v569 = vadd.f32 %v568, 1.0
  %v570 = vmul.f32 %v569, 0.5
  %v571 = vmul.f32 %v551, %v570
  %v572 = vmul.f32 %v552, %v562
  %v573 = vadd.f32 %v571, %v572
  %v574 = vmul.f32 %v551, %v551
  %v575 = vsub.f32 1.0, %v570
  %v576 = vmul.f32 %v570, %v575
  %v577 = vmul.f32 %v574, %v576
  %v578 = vmul.f32 %v552, %v552
  %v579 = vmul.f32 %v562, %v562
  %v580 = vsub.f32 %v570, %v579
  %v581 = vmul.f32 %v578, %v580
  %v582 = vadd.f32 %v577, %v581
  %v583 = vmul.f32 %v551, %v552
  %v584 = vmul.f32 %v570, 2.0
  %v585 = vsub.f32 1.0, %v584
  %v586 = vmul.f32 %v562, %v585
  %v587 = vmul.f32 %v583, %v586
  %v588 = vadd.f32 %v582, %v587
  %v589 = vmax.f32 %v588, 0.0
  %v590 = vrsqrt.pop %v589
  %v591 = vmul.f32 %v589, %v590
  %vm592 = vcmp.eq.f32.partialorder %v589, inf
  %v593 = vsel %vm592, %v589, %v591
  %vm594 = vcmp.eq.f32.partialorder %v589, 0.0
  %v595 = vand.u32 %v589, 2147483648
  %v596 = vsel %vm594, %v595, %v593
  %s597 = scalar_lea.vmem %s2, 128
  %v598 = vld [vmem:[%s597] sm:$0xf]
  %v599 = vld [vmem:[%s597 + $0x4] sm:$0xf]
  %v600 = vld [vmem:[%s597 + $0x8] sm:$0xf]
  %v601 = vld [vmem:[%s597 + $0xc] sm:$0xf]
  %v602 = vld [vmem:[%s597 + $0x10] sm:$0xf]
  %v603 = vld [vmem:[%s597 + $0x14] sm:$0xf]
  %v604 = vld [vmem:[%s597 + $0x18] sm:$0xf]
  %v605 = vld [vmem:[%s597 + $0x1c] sm:$0xf]
  %v606 = vld [vmem:[%s597 + $0x20] sm:$0xf]
  %v607 = vld [vmem:[%s597 + $0x24] sm:$0xf]
  %v608 = vld [vmem:[%s597 + $0x28] sm:$0xf]
  %v609 = vld [vmem:[%s597 + $0x2c] sm:$0xf]
  %v610 = vld [vmem:[%s597 + $0x30] sm:$0xf]
  %v611 = vld [vmem:[%s597 + $0x34] sm:$0xf]
  %v612 = vld [vmem:[%s597 + $0x38] sm:$0xf]
  %v613 = vld [vmem:[%s597 + $0x3c] sm:$0xf]
  %s614 = scalar_lea.vmem %s3, 2
  %v615 = vld [vmem:[%s614] sm:$0x1]
  %s616 = scalar_lea.vmem %s4, 2
  %v617 = vld [vmem:[%s616] sm:$0x1]
  %s618 = scalar_lea.vmem %s5, 2
  %v619 = vld [vmem:[%s618] sm:$0x1]
  %v620 = vunpack.c.l.bf16 %v598
  %v621 = vunpack.c.l.bf16 %v599
  %v622 = vunpack.c.l.bf16 %v600
  %v623 = vunpack.c.l.bf16 %v601
  %v624 = vunpack.c.l.bf16 %v602
  %v625 = vunpack.c.l.bf16 %v603
  %v626 = vunpack.c.l.bf16 %v604
  %v627 = vunpack.c.l.bf16 %v605
  %v628 = vunpack.c.l.bf16 %v606
  %v629 = vunpack.c.l.bf16 %v607
  %v630 = vunpack.c.l.bf16 %v608
  %v631 = vunpack.c.l.bf16 %v609
  %v632 = vunpack.c.l.bf16 %v610
  %v633 = vunpack.c.l.bf16 %v611
  %v634 = vunpack.c.l.bf16 %v612
  %v635 = vunpack.c.l.bf16 %v613
  %v636 = vpack.c.bf16 %v573, %v573
  %v638 = vlaneseq
  %v639 = vshrl.u32 %v638, 7
  %v640 = vsub.s32 0, %v639
  %v641 = vrot.slane %v615, %v640
  %v659 = vunpack.c.l.b16 %v598
  %v660 = vunpack.c.l.b16 %v599
  %v661 = vunpack.c.l.b16 %v600
  %v662 = vunpack.c.l.b16 %v601
  %v663 = vunpack.c.l.b16 %v602
  %v664 = vunpack.c.l.b16 %v603
  %v665 = vunpack.c.l.b16 %v604
  %v666 = vunpack.c.l.b16 %v605
  %v667 = vunpack.c.l.b16 %v606
  %v668 = vunpack.c.l.b16 %v607
  %v669 = vunpack.c.l.b16 %v608
  %v670 = vunpack.c.l.b16 %v609
  %v671 = vunpack.c.l.b16 %v610
  %v672 = vunpack.c.l.b16 %v611
  %v673 = vunpack.c.l.b16 %v612
  %v674 = vunpack.c.l.b16 %v613
  %v675 = vpack.c.b16 %v660, %v659
  %v676 = vpack.c.b16 %v662, %v661
  %v677 = vpack.c.b16 %v664, %v663
  %v678 = vpack.c.b16 %v666, %v665
  %v679 = vpack.c.b16 %v668, %v667
  %v680 = vpack.c.b16 %v670, %v669
  %v681 = vpack.c.b16 %v672, %v671
  %v682 = vpack.c.b16 %v674, %v673
  %691 = vmatprep.subr.bf16.mxu0 0
  %692 = vmatpush1.bf16.msra.mxu0 %v675
  %693 = vmatprep.subr.bf16.mxu0 0
  %694 = vmatpush1.bf16.msra.mxu0 %v676
  %695 = vmatprep.subr.bf16.mxu0 0
  %696 = vmatpush1.bf16.msra.mxu0 %v677
  %697 = vmatprep.subr.bf16.mxu0 0
  %698 = vmatpush1.bf16.msra.mxu0 %v678
  %699 = vmatprep.subr.bf16.mxu0 0
  %700 = vmatpush1.bf16.msra.mxu0 %v679
  %701 = vmatprep.subr.bf16.mxu0 0
  %702 = vmatpush1.bf16.msra.mxu0 %v680
  %703 = vmatprep.subr.bf16.mxu0 0
  %704 = vmatpush1.bf16.msra.mxu0 %v681
  %705 = vmatprep.subr.bf16.mxu0 0
  %706 = vmatpush1.bf16.msra.mxu0 %v682
  %707 = vmatprep.subr.bf16.mxu0 0
  %708 = vmatpush1.bf16.msra.mxu0 0
  %709 = vmatprep.subr.bf16.mxu0 0
  %710 = vmatpush1.bf16.msra.mxu0 0
  %711 = vmatprep.subr.bf16.mxu0 0
  %712 = vmatpush1.bf16.msra.mxu0 0
  %713 = vmatprep.subr.bf16.mxu0 0
  %714 = vmatpush1.bf16.msra.mxu0 0
  %715 = vmatprep.subr.bf16.mxu0 0
  %716 = vmatpush1.bf16.msra.mxu0 0
  %717 = vmatprep.subr.bf16.mxu0 0
  %718 = vmatpush1.bf16.msra.mxu0 0
  %719 = vmatprep.subr.bf16.mxu0 0
  %720 = vmatpush1.bf16.msra.mxu0 0
  %721 = vmatprep.subr.bf16.mxu0 0
  %722 = vmatpush1.bf16.msra.mxu0 0
  %723 = vmatprep.mubr.bf16.mxu0 0
  %724 = vmatmul.mubr.bf16.gmra.mrb[0].mxu0 %v636
  %v725 = vpop.f32.mrb[0].mxu0
  %v726 = vadd.f32 %v641, %v725
  %v727 = vpop.f32.mrb[0].mxu0
  %v728 = vpop.f32.mrb[0].mxu0
  %v729 = vpop.f32.mrb[0].mxu0
  %730 = vdwg.mxu0
  %v731 = vmul.f32 %v620, %v620
  %v732 = vmul.f32 %v621, %v621
  %v733 = vmul.f32 %v622, %v622
  %v734 = vmul.f32 %v623, %v623
  %v735 = vmul.f32 %v624, %v624
  %v736 = vmul.f32 %v625, %v625
  %v737 = vmul.f32 %v626, %v626
  %v738 = vmul.f32 %v627, %v627
  %v739 = vmul.f32 %v628, %v628
  %v740 = vmul.f32 %v629, %v629
  %v741 = vmul.f32 %v630, %v630
  %v742 = vmul.f32 %v631, %v631
  %v743 = vmul.f32 %v632, %v632
  %v744 = vmul.f32 %v633, %v633
  %v745 = vmul.f32 %v634, %v634
  %v746 = vmul.f32 %v635, %v635
  %v747 = vpack.c.bf16 %v732, %v731
  %v748 = vpack.c.bf16 %v734, %v733
  %v749 = vpack.c.bf16 %v736, %v735
  %v750 = vpack.c.bf16 %v738, %v737
  %v751 = vpack.c.bf16 %v740, %v739
  %v752 = vpack.c.bf16 %v742, %v741
  %v753 = vpack.c.bf16 %v744, %v743
  %v754 = vpack.c.bf16 %v746, %v745
  %v755 = vmul.f32 %v596, %v596
  %v756 = vpack.c.bf16 %v755, %v755
  %757 = vmatprep.subr.bf16.mxu0 0
  %758 = vmatpush1.bf16.msra.mxu0 %v747
  %759 = vmatprep.subr.bf16.mxu0 0
  %760 = vmatpush1.bf16.msra.mxu0 %v748
  %761 = vmatprep.subr.bf16.mxu0 0
  %762 = vmatpush1.bf16.msra.mxu0 %v749
  %763 = vmatprep.subr.bf16.mxu0 0
  %764 = vmatpush1.bf16.msra.mxu0 %v750
  %765 = vmatprep.subr.bf16.mxu0 0
  %766 = vmatpush1.bf16.msra.mxu0 %v751
  %767 = vmatprep.subr.bf16.mxu0 0
  %768 = vmatpush1.bf16.msra.mxu0 %v752
  %769 = vmatprep.subr.bf16.mxu0 0
  %770 = vmatpush1.bf16.msra.mxu0 %v753
  %771 = vmatprep.subr.bf16.mxu0 0
  %772 = vmatpush1.bf16.msra.mxu0 %v754
  %773 = vmatprep.subr.bf16.mxu0 0
  %774 = vmatpush1.bf16.msra.mxu0 0
  %775 = vmatprep.subr.bf16.mxu0 0
  %776 = vmatpush1.bf16.msra.mxu0 0
  %777 = vmatprep.subr.bf16.mxu0 0
  %778 = vmatpush1.bf16.msra.mxu0 0
  %779 = vmatprep.subr.bf16.mxu0 0
  %780 = vmatpush1.bf16.msra.mxu0 0
  %781 = vmatprep.subr.bf16.mxu0 0
  %782 = vmatpush1.bf16.msra.mxu0 0
  %783 = vmatprep.subr.bf16.mxu0 0
  %784 = vmatpush1.bf16.msra.mxu0 0
  %785 = vmatprep.subr.bf16.mxu0 0
  %786 = vmatpush1.bf16.msra.mxu0 0
  %787 = vmatprep.subr.bf16.mxu0 0
  %788 = vmatpush1.bf16.msra.mxu0 0
  %789 = vmatprep.mubr.bf16.mxu0 0
  %790 = vmatmul.mubr.bf16.gmra.mrb[0].mxu0 %v756
  %v791 = vpop.f32.mrb[0].mxu0
  %v792 = vadd.f32 0.0, %v791
  %v793 = vpop.f32.mrb[0].mxu0
  %v794 = vpop.f32.mrb[0].mxu0
  %v795 = vpop.f32.mrb[0].mxu0
  %796 = vdwg.mxu0
  %v797 = vmax.f32 %v792, 0.0
  %v798 = vrsqrt.pop %v797
  %v799 = vmul.f32 %v797, %v798
  %vm800 = vcmp.eq.f32.partialorder %v797, inf
  %v801 = vsel %vm800, %v797, %v799
  %vm802 = vcmp.eq.f32.partialorder %v797, 0.0
  %v803 = vand.u32 %v797, 2147483648
  %v804 = vsel %vm802, %v803, %v801
  %v805 = vrot.slane %v726, 4
  %v806 = vadd.f32 %v726, %v805
  %v807 = vrot.slane %v806, 2
  %v808 = vadd.f32 %v806, %v807
  %v809 = vrot.slane %v808, 1
  %v810 = vadd.f32 %v808, %v809
  %v811 = vmul.f32 %v810, %v238
  %v812 = vsub.f32 %v726, %v811
  %v813 = vmul.f32 %v812, %v812
  %v814 = vrot.slane %v813, 4
  %v815 = vadd.f32 %v813, %v814
  %v816 = vrot.slane %v815, 2
  %v817 = vadd.f32 %v815, %v816
  %v818 = vrot.slane %v817, 1
  %v819 = vadd.f32 %v817, %v818
  %v820 = vmul.f32 %v819, %v238
  %v821 = vadd.f32 %v820, 1e-05
  %v822 = vrsqrt.pop %v821
  %v823 = vmul.f32 %v617, %v822
  %v825 = vlaneseq
  %v826 = vshrl.u32 %v825, 7
  %v827 = vsub.s32 0, %v826
  %v828 = vrot.slane %v823, %v827
  %v830 = vmul.f32 %v812, %v828
  %v832 = vlaneseq
  %v833 = vshrl.u32 %v832, 7
  %v834 = vsub.s32 0, %v833
  %v835 = vrot.slane %v619, %v834
  %v837 = vadd.f32 %v830, %v835
  %v838 = vmul.f32 %v804, %v828
  %v839 = vadd.f32 %v838, 1e-12
  %v840 = vrcp.pop %v839
  %v841 = vmul.f32 %v837, %v840
  %v842 = vmax.f32 %v841, -30.0
  %v843 = vmin.f32 %v842, 30.0
  %v844 = vmul.f32 %v843, -0.5
  %v845 = vmul.f32 %v844, %v843
  %v846 = vmul.f32 %v845, 1.442695
  %v847 = vpow.pop %v846
  %v848 = vmul.f32 %v847, 0.3989423
  %v849 = vmul.f32 %v843, 0.044715
  %v850 = vmul.f32 %v849, %v843
  %v851 = vmul.f32 %v850, %v843
  %v852 = vadd.f32 %v843, %v851
  %v853 = vmul.f32 %v852, 0.7978846
  %v854 = vtanh.pop %v853
  %v855 = vadd.f32 %v854, 1.0
  %v856 = vmul.f32 %v855, 0.5
  %v857 = vmul.f32 %v837, %v856
  %v858 = vmul.f32 %v838, %v848
  %v859 = vadd.f32 %v857, %v858
  %v860 = vmul.f32 %v837, %v837
  %v861 = vsub.f32 1.0, %v856
  %v862 = vmul.f32 %v856, %v861
  %v863 = vmul.f32 %v860, %v862
  %v864 = vmul.f32 %v838, %v838
  %v865 = vmul.f32 %v848, %v848
  %v866 = vsub.f32 %v856, %v865
  %v867 = vmul.f32 %v864, %v866
  %v868 = vadd.f32 %v863, %v867
  %v869 = vmul.f32 %v837, %v838
  %v870 = vmul.f32 %v856, 2.0
  %v871 = vsub.f32 1.0, %v870
  %v872 = vmul.f32 %v848, %v871
  %v873 = vmul.f32 %v869, %v872
  %v874 = vadd.f32 %v868, %v873
  %v875 = vmax.f32 %v874, 0.0
  %v876 = vrsqrt.pop %v875
  %v877 = vmul.f32 %v875, %v876
  %vm878 = vcmp.eq.f32.partialorder %v875, inf
  %v879 = vsel %vm878, %v875, %v877
  %vm880 = vcmp.eq.f32.partialorder %v875, 0.0
  %v881 = vand.u32 %v875, 2147483648
  %v882 = vsel %vm880, %v881, %v879
  %s883 = scalar_lea.vmem %s2, 192
  %v884 = vld [vmem:[%s883] sm:$0xf]
  %v885 = vld [vmem:[%s883 + $0x4] sm:$0xf]
  %v886 = vld [vmem:[%s883 + $0x8] sm:$0xf]
  %v887 = vld [vmem:[%s883 + $0xc] sm:$0xf]
  %v888 = vld [vmem:[%s883 + $0x10] sm:$0xf]
  %v889 = vld [vmem:[%s883 + $0x14] sm:$0xf]
  %v890 = vld [vmem:[%s883 + $0x18] sm:$0xf]
  %v891 = vld [vmem:[%s883 + $0x1c] sm:$0xf]
  %v892 = vld [vmem:[%s883 + $0x20] sm:$0xf]
  %v893 = vld [vmem:[%s883 + $0x24] sm:$0xf]
  %v894 = vld [vmem:[%s883 + $0x28] sm:$0xf]
  %v895 = vld [vmem:[%s883 + $0x2c] sm:$0xf]
  %v896 = vld [vmem:[%s883 + $0x30] sm:$0xf]
  %v897 = vld [vmem:[%s883 + $0x34] sm:$0xf]
  %v898 = vld [vmem:[%s883 + $0x38] sm:$0xf]
  %v899 = vld [vmem:[%s883 + $0x3c] sm:$0xf]
  %s900 = scalar_lea.vmem %s3, 3
  %v901 = vld [vmem:[%s900] sm:$0x1]
  %s902 = scalar_lea.vmem %s4, 3
  %v903 = vld [vmem:[%s902] sm:$0x1]
  %s904 = scalar_lea.vmem %s5, 3
  %v905 = vld [vmem:[%s904] sm:$0x1]
  %v906 = vunpack.c.l.bf16 %v884
  %v907 = vunpack.c.l.bf16 %v885
  %v908 = vunpack.c.l.bf16 %v886
  %v909 = vunpack.c.l.bf16 %v887
  %v910 = vunpack.c.l.bf16 %v888
  %v911 = vunpack.c.l.bf16 %v889
  %v912 = vunpack.c.l.bf16 %v890
  %v913 = vunpack.c.l.bf16 %v891
  %v914 = vunpack.c.l.bf16 %v892
  %v915 = vunpack.c.l.bf16 %v893
  %v916 = vunpack.c.l.bf16 %v894
  %v917 = vunpack.c.l.bf16 %v895
  %v918 = vunpack.c.l.bf16 %v896
  %v919 = vunpack.c.l.bf16 %v897
  %v920 = vunpack.c.l.bf16 %v898
  %v921 = vunpack.c.l.bf16 %v899
  %v922 = vpack.c.bf16 %v859, %v859
  %v924 = vlaneseq
  %v925 = vshrl.u32 %v924, 7
  %v926 = vsub.s32 0, %v925
  %v927 = vrot.slane %v901, %v926
  %v945 = vunpack.c.l.b16 %v884
  %v946 = vunpack.c.l.b16 %v885
  %v947 = vunpack.c.l.b16 %v886
  %v948 = vunpack.c.l.b16 %v887
  %v949 = vunpack.c.l.b16 %v888
  %v950 = vunpack.c.l.b16 %v889
  %v951 = vunpack.c.l.b16 %v890
  %v952 = vunpack.c.l.b16 %v891
  %v953 = vunpack.c.l.b16 %v892
  %v954 = vunpack.c.l.b16 %v893
  %v955 = vunpack.c.l.b16 %v894
  %v956 = vunpack.c.l.b16 %v895
  %v957 = vunpack.c.l.b16 %v896
  %v958 = vunpack.c.l.b16 %v897
  %v959 = vunpack.c.l.b16 %v898
  %v960 = vunpack.c.l.b16 %v899
  %v961 = vpack.c.b16 %v946, %v945
  %v962 = vpack.c.b16 %v948, %v947
  %v963 = vpack.c.b16 %v950, %v949
  %v964 = vpack.c.b16 %v952, %v951
  %v965 = vpack.c.b16 %v954, %v953
  %v966 = vpack.c.b16 %v956, %v955
  %v967 = vpack.c.b16 %v958, %v957
  %v968 = vpack.c.b16 %v960, %v959
  %977 = vmatprep.subr.bf16.mxu0 0
  %978 = vmatpush1.bf16.msra.mxu0 %v961
  %979 = vmatprep.subr.bf16.mxu0 0
  %980 = vmatpush1.bf16.msra.mxu0 %v962
  %981 = vmatprep.subr.bf16.mxu0 0
  %982 = vmatpush1.bf16.msra.mxu0 %v963
  %983 = vmatprep.subr.bf16.mxu0 0
  %984 = vmatpush1.bf16.msra.mxu0 %v964
  %985 = vmatprep.subr.bf16.mxu0 0
  %986 = vmatpush1.bf16.msra.mxu0 %v965
  %987 = vmatprep.subr.bf16.mxu0 0
  %988 = vmatpush1.bf16.msra.mxu0 %v966
  %989 = vmatprep.subr.bf16.mxu0 0
  %990 = vmatpush1.bf16.msra.mxu0 %v967
  %991 = vmatprep.subr.bf16.mxu0 0
  %992 = vmatpush1.bf16.msra.mxu0 %v968
  %993 = vmatprep.subr.bf16.mxu0 0
  %994 = vmatpush1.bf16.msra.mxu0 0
  %995 = vmatprep.subr.bf16.mxu0 0
  %996 = vmatpush1.bf16.msra.mxu0 0
  %997 = vmatprep.subr.bf16.mxu0 0
  %998 = vmatpush1.bf16.msra.mxu0 0
  %999 = vmatprep.subr.bf16.mxu0 0
  %1000 = vmatpush1.bf16.msra.mxu0 0
  %1001 = vmatprep.subr.bf16.mxu0 0
  %1002 = vmatpush1.bf16.msra.mxu0 0
  %1003 = vmatprep.subr.bf16.mxu0 0
  %1004 = vmatpush1.bf16.msra.mxu0 0
  %1005 = vmatprep.subr.bf16.mxu0 0
  %1006 = vmatpush1.bf16.msra.mxu0 0
  %1007 = vmatprep.subr.bf16.mxu0 0
  %1008 = vmatpush1.bf16.msra.mxu0 0
  %1009 = vmatprep.mubr.bf16.mxu0 0
  %1010 = vmatmul.mubr.bf16.gmra.mrb[0].mxu0 %v922
  %v1011 = vpop.f32.mrb[0].mxu0
  %v1012 = vadd.f32 %v927, %v1011
  %v1013 = vpop.f32.mrb[0].mxu0
  %v1014 = vpop.f32.mrb[0].mxu0
  %v1015 = vpop.f32.mrb[0].mxu0
  %1016 = vdwg.mxu0
  %v1017 = vmul.f32 %v906, %v906
  %v1018 = vmul.f32 %v907, %v907
  %v1019 = vmul.f32 %v908, %v908
  %v1020 = vmul.f32 %v909, %v909
  %v1021 = vmul.f32 %v910, %v910
  %v1022 = vmul.f32 %v911, %v911
  %v1023 = vmul.f32 %v912, %v912
  %v1024 = vmul.f32 %v913, %v913
  %v1025 = vmul.f32 %v914, %v914
  %v1026 = vmul.f32 %v915, %v915
  %v1027 = vmul.f32 %v916, %v916
  %v1028 = vmul.f32 %v917, %v917
  %v1029 = vmul.f32 %v918, %v918
  %v1030 = vmul.f32 %v919, %v919
  %v1031 = vmul.f32 %v920, %v920
  %v1032 = vmul.f32 %v921, %v921
  %v1033 = vpack.c.bf16 %v1018, %v1017
  %v1034 = vpack.c.bf16 %v1020, %v1019
  %v1035 = vpack.c.bf16 %v1022, %v1021
  %v1036 = vpack.c.bf16 %v1024, %v1023
  %v1037 = vpack.c.bf16 %v1026, %v1025
  %v1038 = vpack.c.bf16 %v1028, %v1027
  %v1039 = vpack.c.bf16 %v1030, %v1029
  %v1040 = vpack.c.bf16 %v1032, %v1031
  %v1041 = vmul.f32 %v882, %v882
  %v1042 = vpack.c.bf16 %v1041, %v1041
  %1043 = vmatprep.subr.bf16.mxu0 0
  %1044 = vmatpush1.bf16.msra.mxu0 %v1033
  %1045 = vmatprep.subr.bf16.mxu0 0
  %1046 = vmatpush1.bf16.msra.mxu0 %v1034
  %1047 = vmatprep.subr.bf16.mxu0 0
  %1048 = vmatpush1.bf16.msra.mxu0 %v1035
  %1049 = vmatprep.subr.bf16.mxu0 0
  %1050 = vmatpush1.bf16.msra.mxu0 %v1036
  %1051 = vmatprep.subr.bf16.mxu0 0
  %1052 = vmatpush1.bf16.msra.mxu0 %v1037
  %1053 = vmatprep.subr.bf16.mxu0 0
  %1054 = vmatpush1.bf16.msra.mxu0 %v1038
  %1055 = vmatprep.subr.bf16.mxu0 0
  %1056 = vmatpush1.bf16.msra.mxu0 %v1039
  %1057 = vmatprep.subr.bf16.mxu0 0
  %1058 = vmatpush1.bf16.msra.mxu0 %v1040
  %1059 = vmatprep.subr.bf16.mxu0 0
  %1060 = vmatpush1.bf16.msra.mxu0 0
  %1061 = vmatprep.subr.bf16.mxu0 0
  %1062 = vmatpush1.bf16.msra.mxu0 0
  %1063 = vmatprep.subr.bf16.mxu0 0
  %1064 = vmatpush1.bf16.msra.mxu0 0
  %1065 = vmatprep.subr.bf16.mxu0 0
  %1066 = vmatpush1.bf16.msra.mxu0 0
  %1067 = vmatprep.subr.bf16.mxu0 0
  %1068 = vmatpush1.bf16.msra.mxu0 0
  %1069 = vmatprep.subr.bf16.mxu0 0
  %1070 = vmatpush1.bf16.msra.mxu0 0
  %1071 = vmatprep.subr.bf16.mxu0 0
  %1072 = vmatpush1.bf16.msra.mxu0 0
  %1073 = vmatprep.subr.bf16.mxu0 0
  %1074 = vmatpush1.bf16.msra.mxu0 0
  %1075 = vmatprep.mubr.bf16.mxu0 0
  %1076 = vmatmul.mubr.bf16.gmra.mrb[0].mxu0 %v1042
  %v1077 = vpop.f32.mrb[0].mxu0
  %v1078 = vadd.f32 0.0, %v1077
  %v1079 = vpop.f32.mrb[0].mxu0
  %v1080 = vpop.f32.mrb[0].mxu0
  %v1081 = vpop.f32.mrb[0].mxu0
  %1082 = vdwg.mxu0
  %v1083 = vmax.f32 %v1078, 0.0
  %v1084 = vrsqrt.pop %v1083
  %v1085 = vmul.f32 %v1083, %v1084
  %vm1086 = vcmp.eq.f32.partialorder %v1083, inf
  %v1087 = vsel %vm1086, %v1083, %v1085
  %vm1088 = vcmp.eq.f32.partialorder %v1083, 0.0
  %v1089 = vand.u32 %v1083, 2147483648
  %v1090 = vsel %vm1088, %v1089, %v1087
  %v1091 = vrot.slane %v1012, 4
  %v1092 = vadd.f32 %v1012, %v1091
  %v1093 = vrot.slane %v1092, 2
  %v1094 = vadd.f32 %v1092, %v1093
  %v1095 = vrot.slane %v1094, 1
  %v1096 = vadd.f32 %v1094, %v1095
  %v1097 = vmul.f32 %v1096, %v238
  %v1098 = vsub.f32 %v1012, %v1097
  %v1099 = vmul.f32 %v1098, %v1098
  %v1100 = vrot.slane %v1099, 4
  %v1101 = vadd.f32 %v1099, %v1100
  %v1102 = vrot.slane %v1101, 2
  %v1103 = vadd.f32 %v1101, %v1102
  %v1104 = vrot.slane %v1103, 1
  %v1105 = vadd.f32 %v1103, %v1104
  %v1106 = vmul.f32 %v1105, %v238
  %v1107 = vadd.f32 %v1106, 1e-05
  %v1108 = vrsqrt.pop %v1107
  %v1109 = vmul.f32 %v903, %v1108
  %v1111 = vlaneseq
  %v1112 = vshrl.u32 %v1111, 7
  %v1113 = vsub.s32 0, %v1112
  %v1114 = vrot.slane %v1109, %v1113
  %v1116 = vmul.f32 %v1098, %v1114
  %v1118 = vlaneseq
  %v1119 = vshrl.u32 %v1118, 7
  %v1120 = vsub.s32 0, %v1119
  %v1121 = vrot.slane %v905, %v1120
  %v1123 = vadd.f32 %v1116, %v1121
  %v1124 = vmul.f32 %v1090, %v1114
  %v1125 = vadd.f32 %v1124, 1e-12
  %v1126 = vrcp.pop %v1125
  %v1127 = vmul.f32 %v1123, %v1126
  %v1128 = vmax.f32 %v1127, -30.0
  %v1129 = vmin.f32 %v1128, 30.0
  %v1130 = vmul.f32 %v1129, -0.5
  %v1131 = vmul.f32 %v1130, %v1129
  %v1132 = vmul.f32 %v1131, 1.442695
  %v1133 = vpow.pop %v1132
  %v1134 = vmul.f32 %v1133, 0.3989423
  %v1135 = vmul.f32 %v1129, 0.044715
  %v1136 = vmul.f32 %v1135, %v1129
  %v1137 = vmul.f32 %v1136, %v1129
  %v1138 = vadd.f32 %v1129, %v1137
  %v1139 = vmul.f32 %v1138, 0.7978846
  %v1140 = vtanh.pop %v1139
  %v1141 = vadd.f32 %v1140, 1.0
  %v1142 = vmul.f32 %v1141, 0.5
  %v1143 = vmul.f32 %v1123, %v1142
  %v1144 = vmul.f32 %v1124, %v1134
  %v1145 = vadd.f32 %v1143, %v1144
  %v1146 = vmul.f32 %v1123, %v1123
  %v1147 = vsub.f32 1.0, %v1142
  %v1148 = vmul.f32 %v1142, %v1147
  %v1149 = vmul.f32 %v1146, %v1148
  %v1150 = vmul.f32 %v1124, %v1124
  %v1151 = vmul.f32 %v1134, %v1134
  %v1152 = vsub.f32 %v1142, %v1151
  %v1153 = vmul.f32 %v1150, %v1152
  %v1154 = vadd.f32 %v1149, %v1153
  %v1155 = vmul.f32 %v1123, %v1124
  %v1156 = vmul.f32 %v1142, 2.0
  %v1157 = vsub.f32 1.0, %v1156
  %v1158 = vmul.f32 %v1134, %v1157
  %v1159 = vmul.f32 %v1155, %v1158
  %v1160 = vadd.f32 %v1154, %v1159
  %v1161 = vmax.f32 %v1160, 0.0
  %v1162 = vrsqrt.pop %v1161
  %v1163 = vmul.f32 %v1161, %v1162
  %vm1164 = vcmp.eq.f32.partialorder %v1161, inf
  %v1165 = vsel %vm1164, %v1161, %v1163
  %vm1166 = vcmp.eq.f32.partialorder %v1161, 0.0
  %v1167 = vand.u32 %v1161, 2147483648
  %v1168 = vsel %vm1166, %v1167, %v1165
  %1169 = vst [vmem:[%s6] sm:$0xff] %v1145
  %1170 = vst [vmem:[%s7] sm:$0xff] %v1168
  // Predicated region
  $region26: #{monet_forward.1} parent=0 // pred_check
    _
  $region27: #{monet_forward.1} parent=0 // pred_check_branch
    %1172 = sbr.rel (0) target = $region29
  $region28: #{monet_forward.1} parent=0 // pred_region
    _
  $region29: #{monet_forward.1} parent=0 // pred_fallthru
    _
  // Predicated region
  $region30: #{monet_forward.1} parent=0 // pred_check
    _
  $region31: #{monet_forward.1} parent=0 // pred_check_branch
    %1174 = sbr.rel (0) target = $region33
  $region32: #{monet_forward.1} parent=0 // pred_region
    _
  $region33: #{monet_forward.1} parent=0 // pred_fallthru
    _
  // Predicated region
  $region34: #{monet_forward.1} parent=0 // pred_check
    _
  $region35: #{monet_forward.1} parent=0 // pred_check_branch
    %1176 = sbr.rel (0) target = $region37
  $region36: #{monet_forward.1} parent=0 // pred_region
    _
  $region37: #{monet_forward.1} parent=0 // pred_fallthru
    _
  // Predicated region
  $region38: #{monet_forward.1} parent=0 // pred_check
    _
  $region39: #{monet_forward.1} parent=0 // pred_check_branch
    %1178 = sbr.rel (0) target = $region41
  $region40: #{monet_forward.1} parent=0 // pred_region
    _
  $region41: #{monet_forward.1} parent=0 // pred_fallthru
    _

</llo_original>
